<compile_context>
chip_gen: v5e
topology: v5e:2x2
jax: 0.10.0
libtpu: 0.0.40
codegen_flags: <defaults>
</compile_context>

<pallas_src>
import functools
import math

import jax
import jax.numpy as jnp
from jax.experimental import pallas as pl
from jax.experimental.pallas import tpu as pltpu

# ----------------------------- config ---------------------------------------
BATCH = 2
SEQ = 8
HIDDEN = 32
NUM_HEADS = 2
HEAD_DIM = HIDDEN // NUM_HEADS
INTERMEDIATE = 64
NUM_LAYERS = 2
VOCAB = 100
VOCAB_PAD = 128                  # pad vocab to a full lane width for the MXU gather
MAX_POS = 16
TYPE_VOCAB = 2
NUM_LABELS = 4
NUM_LABELS_PAD = 128             # lane-dense classifier head / logits store
LN_EPS = 1e-12
IGNORE_INDEX = -100              # torch CrossEntropyLoss default ignore_index
NEG_BIG = -1e9


def _vmem_spec():
    return pl.BlockSpec(memory_space=pltpu.MemorySpace.VMEM)


# ----------------------------- fused kernel ----------------------------------
def _nug_fused_kernel(
    ids_ref, bias_ref, labels_ref,
    wemb_ref, pos_type_ref, lne_g_ref, lne_b_ref,
    wqkv_ref, bqkv_ref, wo_ref, bo_ref, ln1_g_ref, ln1_b_ref,
    w1_ref, b1_ref, w2_ref, b2_ref, ln2_g_ref, ln2_b_ref,
    wout_ref, bout_ref,
    logits_ref, loss_ref,
    *, batch, seq,
):
    n = batch * seq

    def ln(x, g, b):
        mean = jnp.mean(x, axis=-1, keepdims=True)
        var = jnp.mean((x - mean) ** 2, axis=-1, keepdims=True)
        return (x - mean) * jax.lax.rsqrt(var + LN_EPS) * g + b

    def mm(x, w, b):
        # bf16 MXU operands, f32 accumulation; bias add in f32.
        return jnp.dot(x.astype(jnp.bfloat16), w,
                       preferred_element_type=jnp.float32) + b

    # ---- embeddings: one-hot gather on the MXU + pos/type add + LN ----------
    ids = ids_ref[...]                                          # (n, 1) int32
    vocab_iota = jax.lax.broadcasted_iota(jnp.int32, (n, VOCAB_PAD), 1)
    onehot = (vocab_iota == ids).astype(jnp.float32)            # (n, VOCAB_PAD)
    emb = jnp.dot(onehot, wemb_ref[...], preferred_element_type=jnp.float32)
    pos_type = pos_type_ref[...]                                # (seq, HIDDEN)
    emb = emb + jnp.concatenate([pos_type] * batch, axis=0)     # tile over batch on-chip
    x = ln(emb, lne_g_ref[...], lne_b_ref[...])                 # (n, HIDDEN) f32

    bias = bias_ref[...]                                        # (batch, 1, seq) additive mask
    scale = 1.0 / math.sqrt(HEAD_DIM)

    for l in range(NUM_LAYERS):
        # ---- attention: fused QKV projection, heads split on-chip ----------
        qkv = mm(x, wqkv_ref[l], bqkv_ref[l])                   # (n, 3*HIDDEN)
        heads = []
        for h in range(NUM_HEADS):
            lo = h * HEAD_DIM
            q = qkv[:, lo:lo + HEAD_DIM]
            k = qkv[:, HIDDEN + lo:HIDDEN + lo + HEAD_DIM]
            v = qkv[:, 2 * HIDDEN + lo:2 * HIDDEN + lo + HEAD_DIM]
            q3 = q.reshape(batch, seq, HEAD_DIM).astype(jnp.bfloat16)
            k3 = k.reshape(batch, seq, HEAD_DIM).astype(jnp.bfloat16)
            v3 = v.reshape(batch, seq, HEAD_DIM).astype(jnp.bfloat16)
            s = jnp.einsum("bqd,bkd->bqk", q3, k3,
                           preferred_element_type=jnp.float32) * scale
            s = s + bias                                        # (batch, seq, seq)
            m = jnp.max(s, axis=-1, keepdims=True)
            p = jnp.exp(s - m)
            p = p * pl.reciprocal(jnp.sum(p, axis=-1, keepdims=True), approx=False)
            ctx = jnp.einsum("bqk,bkd->bqd", p.astype(jnp.bfloat16), v3,
                             preferred_element_type=jnp.float32)
            heads.append(ctx.reshape(n, HEAD_DIM))
        ctx = jnp.concatenate(heads, axis=-1)                   # (n, HIDDEN)

        attn_out = mm(ctx, wo_ref[l], bo_ref[l])
        x = ln(x + attn_out, ln1_g_ref[l], ln1_b_ref[l])

        # ---- FFN -----------------------------------------------------------
        h1 = mm(x, w1_ref[l], b1_ref[l])                        # (n, INTERMEDIATE)
        c = math.sqrt(2.0 / math.pi)
        h1 = 0.5 * h1 * (1.0 + jnp.tanh(c * (h1 + 0.044715 * h1 * h1 * h1)))
        h2 = mm(h1, w2_ref[l], b2_ref[l])
        x = ln(x + h2, ln2_g_ref[l], ln2_b_ref[l])

    # dropout(p=0.3): identity in eval mode
    # ---- classifier head (lane-padded) + masked cross-entropy (fused) -------
    # wout/bout are padded to NUM_LABELS_PAD lanes; padded columns have a -1e9
    # bias so they contribute nothing to the log-sum-exp below, and the store
    # to logits_ref is a full-width, unmasked vst.
    logits = jnp.dot(x, wout_ref[...], preferred_element_type=jnp.float32) + bout_ref[...]
    logits_ref[...] = logits.astype(logits_ref.dtype)           # (n, NUM_LABELS_PAD)

    labels = labels_ref[...]                                    # (n, 1) int32
    m = jnp.max(logits, axis=-1, keepdims=True)
    lse = jnp.log(jnp.sum(jnp.exp(logits - m), axis=-1, keepdims=True)) + m
    valid = labels != IGNORE_INDEX
    safe = jnp.where(valid, labels, 0)
    cls_ids = jax.lax.broadcasted_iota(jnp.int32, logits.shape, 1)
    picked = jnp.sum(logits * (cls_ids == safe).astype(jnp.float32),
                     axis=-1, keepdims=True)
    validf = valid.astype(jnp.float32)
    per_tok = (lse - picked) * validf                           # (n, 1)
    total = jnp.sum(per_tok, axis=0, keepdims=True)             # (1, 1)
    count = jnp.sum(validf, axis=0, keepdims=True)              # (1, 1)
    loss_ref[...] = total / jnp.maximum(count, 1.0)             # guard all-masked batch


# ----------------------------- params -----------------------------------------
def init_params(key):
    keys = iter(jax.random.split(key, 64))

    def normal(shape, scale=0.02):
        return jax.random.normal(next(keys), shape, jnp.float32) * scale

    def stack(make):
        return jnp.stack([make() for _ in range(NUM_LAYERS)], axis=0)

    word_emb = normal((VOCAB, HIDDEN))
    word_emb_pad = jnp.zeros((VOCAB_PAD, HIDDEN), jnp.float32).at[:VOCAB].set(word_emb)

    # lane-padded classifier head: zero weights / -1e9 bias in padded columns
    w_out = normal((HIDDEN, NUM_LABELS))
    b_out = jnp.zeros((1, NUM_LABELS), jnp.float32)
    w_out_pad = jnp.zeros((HIDDEN, NUM_LABELS_PAD), jnp.float32).at[:, :NUM_LABELS].set(w_out)
    b_out_pad = jnp.full((1, NUM_LABELS_PAD), NEG_BIG, jnp.float32).at[:, :NUM_LABELS].set(b_out)

    params = {
        "word_emb_pad": word_emb_pad,
        "pos_emb": normal((MAX_POS, HIDDEN)),
        "type_emb": normal((TYPE_VOCAB, HIDDEN)),
        "emb_ln_g": jnp.ones((1, HIDDEN), jnp.float32),
        "emb_ln_b": jnp.zeros((1, HIDDEN), jnp.float32),
        # fused QKV weights (lane-dense (H, 3H)); matmul weights stored bf16
        "wqkv": stack(lambda: normal((HIDDEN, 3 * HIDDEN))).astype(jnp.bfloat16),
        "bqkv": jnp.zeros((NUM_LAYERS, 1, 3 * HIDDEN), jnp.float32),
        "wo": stack(lambda: normal((HIDDEN, HIDDEN))).astype(jnp.bfloat16),
        "bo": jnp.zeros((NUM_LAYERS, 1, HIDDEN), jnp.float32),
        "ln1_g": jnp.ones((NUM_LAYERS, 1, HIDDEN), jnp.float32),
        "ln1_b": jnp.zeros((NUM_LAYERS, 1, HIDDEN), jnp.float32),
        "w1": stack(lambda: normal((HIDDEN, INTERMEDIATE))).astype(jnp.bfloat16),
        "b1": jnp.zeros((NUM_LAYERS, 1, INTERMEDIATE), jnp.float32),
        "w2": stack(lambda: normal((INTERMEDIATE, HIDDEN))).astype(jnp.bfloat16),
        "b2": jnp.zeros((NUM_LAYERS, 1, HIDDEN), jnp.float32),
        "ln2_g": jnp.ones((NUM_LAYERS, 1, HIDDEN), jnp.float32),
        "ln2_b": jnp.zeros((NUM_LAYERS, 1, HIDDEN), jnp.float32),
        "w_out_pad": w_out_pad,
        "b_out_pad": b_out_pad,
    }
    return params


# ----------------------------- forward -----------------------------------------
def nug_forward(params, input_ids, attention_mask, labels=None):
    B, S = input_ids.shape
    N = B * S

    # Tiny scalar/int glue kept in the wrapper (no HBM activation round trips).
    ids2d = input_ids.reshape(N, 1).astype(jnp.int32)
    attn_bias = ((1.0 - attention_mask.astype(jnp.float32)) * -1e9).reshape(B, 1, S)
    pos_type = params["pos_emb"][:S] + params["type_emb"][0][None, :]

    if labels is not None:
        active_labels = jnp.where(attention_mask.reshape(-1) == 1,
                                  labels.reshape(-1), IGNORE_INDEX)
    else:
        active_labels = jnp.full((N,), IGNORE_INDEX)
    active_labels = active_labels.astype(jnp.int32).reshape(N, 1)

    n_inputs = 21
    logits_pad, loss = pl.pallas_call(
        functools.partial(_nug_fused_kernel, batch=B, seq=S),
        out_shape=(jax.ShapeDtypeStruct((N, NUM_LABELS_PAD), jnp.float32),
                   jax.ShapeDtypeStruct((1, 1), jnp.float32)),
        in_specs=[_vmem_spec() for _ in range(n_inputs)],
        out_specs=(_vmem_spec(), _vmem_spec()),
    )(
        ids2d, attn_bias, active_labels,
        params["word_emb_pad"], pos_type, params["emb_ln_g"], params["emb_ln_b"],
        params["wqkv"], params["bqkv"], params["wo"], params["bo"],
        params["ln1_g"], params["ln1_b"],
        params["w1"], params["b1"], params["w2"], params["b2"],
        params["ln2_g"], params["ln2_b"],
        params["w_out_pad"], params["b_out_pad"],
    )

    logits = logits_pad[:, :NUM_LABELS].reshape(B, S, NUM_LABELS)
    loss_out = loss[0, 0] if labels is not None else None
    return loss_out, logits


# ----------------------------- main -------------------------------------------
if __name__ == "__main__":
    key = jax.random.PRNGKey(0)
    pkey, ikey, lkey = jax.random.split(key, 3)
    params = init_params(pkey)

    input_ids = jax.random.randint(ikey, (BATCH, SEQ), 0, VOCAB, dtype=jnp.int32)
    attention_mask = jnp.array(
        [[1, 1, 1, 1, 1, 1, 0, 0],
         [1, 1, 1, 1, 0, 0, 0, 0]], dtype=jnp.int32)
    labels = jax.random.randint(lkey, (BATCH, SEQ), 0, NUM_LABELS, dtype=jnp.int32)

    fwd = jax.jit(nug_forward)
    loss, logits = fwd(params, input_ids, attention_mask, labels)
    jax.block_until_ready((loss, logits))
    assert logits.shape == (BATCH, SEQ, NUM_LABELS)
    assert bool(jnp.isfinite(loss))
    assert bool(jnp.all(jnp.isfinite(logits)))
    print("KERNEL_OK")
</pallas_src>

<mosaic_0001>
module attributes {stable_mosaic.version = 11 : i64} {
  func.func @_nug_fused_kernel(%arg0: memref<16x1xi32, #tpu.memory_space<vmem>>, %arg1: memref<2x1x8xf32, #tpu.memory_space<vmem>>, %arg2: memref<16x1xi32, #tpu.memory_space<vmem>>, %arg3: memref<128x32xf32, #tpu.memory_space<vmem>>, %arg4: memref<8x32xf32, #tpu.memory_space<vmem>>, %arg5: memref<1x32xf32, #tpu.memory_space<vmem>>, %arg6: memref<1x32xf32, #tpu.memory_space<vmem>>, %arg7: memref<2x32x96xbf16, #tpu.memory_space<vmem>>, %arg8: memref<2x1x96xf32, #tpu.memory_space<vmem>>, %arg9: memref<2x32x32xbf16, #tpu.memory_space<vmem>>, %arg10: memref<2x1x32xf32, #tpu.memory_space<vmem>>, %arg11: memref<2x1x32xf32, #tpu.memory_space<vmem>>, %arg12: memref<2x1x32xf32, #tpu.memory_space<vmem>>, %arg13: memref<2x32x64xbf16, #tpu.memory_space<vmem>>, %arg14: memref<2x1x64xf32, #tpu.memory_space<vmem>>, %arg15: memref<2x64x32xbf16, #tpu.memory_space<vmem>>, %arg16: memref<2x1x32xf32, #tpu.memory_space<vmem>>, %arg17: memref<2x1x32xf32, #tpu.memory_space<vmem>>, %arg18: memref<2x1x32xf32, #tpu.memory_space<vmem>>, %arg19: memref<32x128xf32, #tpu.memory_space<vmem>>, %arg20: memref<1x128xf32, #tpu.memory_space<vmem>>, %arg21: memref<16x128xf32, #tpu.memory_space<vmem>>, %arg22: memref<1x1xf32, #tpu.memory_space<vmem>>) attributes {dimension_semantics = [], scalar_prefetch = 0 : i64, scratch_operands = 0 : i64, tpu.core_type = #tpu.core_type<tc>} {
    %c0 = arith.constant 0 : index
    %c0_0 = arith.constant 0 : index
    %0 = vector.load %arg0[%c0, %c0_0] : memref<16x1xi32, #tpu.memory_space<vmem>>, vector<16x1xi32>
    %1 = tpu.iota {dimensions = array<i32: 1>} : vector<16x128xi32>
    %2 = vector.broadcast %0 : vector<16x1xi32> to vector<16x128xi32>
    %3 = arith.cmpi eq, %1, %2 : vector<16x128xi32>
    %4 = arith.extui %3 : vector<16x128xi1> to vector<16x128xi32>
    %5 = arith.sitofp %4 : vector<16x128xi32> to vector<16x128xf32>
    %c0_1 = arith.constant 0 : index
    %c0_2 = arith.constant 0 : index
    %6 = vector.load %arg3[%c0_1, %c0_2] : memref<128x32xf32, #tpu.memory_space<vmem>>, vector<128x32xf32>
    %cst = arith.constant dense<0.000000e+00> : vector<16x32xf32>
    %7 = tpu.matmul %5, %6, %cst {dimension_numbers = #tpu.dot_dimension_numbers<[1], [0], [0], [1], [0, 0, 1, 1], [], []>} : vector<16x128xf32>, vector<128x32xf32>, vector<16x32xf32> -> vector<16x32xf32>
    %c0_3 = arith.constant 0 : index
    %c0_4 = arith.constant 0 : index
    %8 = vector.load %arg4[%c0_3, %c0_4] : memref<8x32xf32, #tpu.memory_space<vmem>>, vector<8x32xf32>
    %9 = tpu.concatenate %8, %8 in 0 : vector<8x32xf32>, vector<8x32xf32> -> vector<16x32xf32>
    %10 = arith.addf %7, %9 : vector<16x32xf32>
    %c0_5 = arith.constant 0 : index
    %c0_6 = arith.constant 0 : index
    %11 = vector.load %arg5[%c0_5, %c0_6] : memref<1x32xf32, #tpu.memory_space<vmem>>, vector<1x32xf32>
    %c0_7 = arith.constant 0 : index
    %c0_8 = arith.constant 0 : index
    %12 = vector.load %arg6[%c0_7, %c0_8] : memref<1x32xf32, #tpu.memory_space<vmem>>, vector<1x32xf32>
    %cst_9 = arith.constant dense<0.000000e+00> : vector<16xf32>
    %13 = vector.multi_reduction <add>, %10, %cst_9 [1] : vector<16x32xf32> to vector<16xf32>
    %14 = vector.shape_cast %13 : vector<16xf32> to vector<16x1xf32>
    %cst_10 = arith.constant 3.200000e+01 : f32
    %15 = vector.broadcast %cst_10 : f32 to vector<16x1xf32>
    %16 = arith.divf %14, %15 : vector<16x1xf32>
    %17 = vector.broadcast %16 : vector<16x1xf32> to vector<16x32xf32>
    %18 = arith.subf %10, %17 : vector<16x32xf32>
    %19 = arith.mulf %18, %18 : vector<16x32xf32>
    %cst_11 = arith.constant dense<0.000000e+00> : vector<16xf32>
    %20 = vector.multi_reduction <add>, %19, %cst_11 [1] : vector<16x32xf32> to vector<16xf32>
    %21 = vector.shape_cast %20 : vector<16xf32> to vector<16x1xf32>
    %cst_12 = arith.constant 3.200000e+01 : f32
    %22 = vector.broadcast %cst_12 : f32 to vector<16x1xf32>
    %23 = arith.divf %21, %22 : vector<16x1xf32>
    %24 = vector.broadcast %16 : vector<16x1xf32> to vector<16x32xf32>
    %25 = arith.subf %10, %24 : vector<16x32xf32>
    %cst_13 = arith.constant 9.99999996E-13 : f32
    %26 = vector.broadcast %cst_13 : f32 to vector<16x1xf32>
    %27 = arith.addf %23, %26 : vector<16x1xf32>
    %28 = math.rsqrt %27 : vector<16x1xf32>
    %29 = vector.broadcast %28 : vector<16x1xf32> to vector<16x32xf32>
    %30 = arith.mulf %25, %29 : vector<16x32xf32>
    %31 = vector.broadcast %11 : vector<1x32xf32> to vector<16x32xf32>
    %32 = arith.mulf %30, %31 : vector<16x32xf32>
    %33 = vector.broadcast %12 : vector<1x32xf32> to vector<16x32xf32>
    %34 = arith.addf %32, %33 : vector<16x32xf32>
    %c0_14 = arith.constant 0 : index
    %c0_15 = arith.constant 0 : index
    %c0_16 = arith.constant 0 : index
    %35 = vector.load %arg1[%c0_14, %c0_15, %c0_16] : memref<2x1x8xf32, #tpu.memory_space<vmem>>, vector<2x1x8xf32>
    %c0_17 = arith.constant 0 : index
    %c0_18 = arith.constant 0 : index
    %c0_19 = arith.constant 0 : index
    %36 = vector.load %arg7[%c0_17, %c0_18, %c0_19] : memref<2x32x96xbf16, #tpu.memory_space<vmem>>, vector<1x32x96xbf16>
    %37 = vector.shape_cast %36 : vector<1x32x96xbf16> to vector<32x96xbf16>
    %c0_20 = arith.constant 0 : index
    %c0_21 = arith.constant 0 : index
    %c0_22 = arith.constant 0 : index
    %38 = vector.load %arg8[%c0_20, %c0_21, %c0_22] : memref<2x1x96xf32, #tpu.memory_space<vmem>>, vector<1x1x96xf32>
    %39 = vector.shape_cast %38 : vector<1x1x96xf32> to vector<1x96xf32>
    %40 = arith.truncf %34 : vector<16x32xf32> to vector<16x32xbf16>
    %cst_23 = arith.constant dense<0.000000e+00> : vector<16x96xf32>
    %41 = tpu.matmul %40, %37, %cst_23 {dimension_numbers = #tpu.dot_dimension_numbers<[1], [0], [0], [1], [0, 0, 1, 1], [], []>} : vector<16x32xbf16>, vector<32x96xbf16>, vector<16x96xf32> -> vector<16x96xf32>
    %42 = vector.broadcast %39 : vector<1x96xf32> to vector<16x96xf32>
    %43 = arith.addf %41, %42 : vector<16x96xf32>
    %44 = vector.extract_strided_slice %43 {offsets = [0, 0], sizes = [16, 16], strides = [1, 1]} : vector<16x96xf32> to vector<16x16xf32>
    %45 = vector.extract_strided_slice %43 {offsets = [0, 32], sizes = [16, 16], strides = [1, 1]} : vector<16x96xf32> to vector<16x16xf32>
    %46 = vector.extract_strided_slice %43 {offsets = [0, 64], sizes = [16, 16], strides = [1, 1]} : vector<16x96xf32> to vector<16x16xf32>
    %47 = vector.shape_cast %44 : vector<16x16xf32> to vector<2x8x16xf32>
    %48 = arith.truncf %47 : vector<2x8x16xf32> to vector<2x8x16xbf16>
    %49 = vector.shape_cast %45 : vector<16x16xf32> to vector<2x8x16xf32>
    %50 = arith.truncf %49 : vector<2x8x16xf32> to vector<2x8x16xbf16>
    %51 = vector.shape_cast %46 : vector<16x16xf32> to vector<2x8x16xf32>
    %52 = arith.truncf %51 : vector<2x8x16xf32> to vector<2x8x16xbf16>
    "tpu.trace_start"() <{level = 10 : i32, message = "bqd,bkd->bqk"}> : () -> ()
    %cst_24 = arith.constant dense<0.000000e+00> : vector<2x8x8xf32>
    %53 = tpu.matmul %48, %50, %cst_24 {dimension_numbers = #tpu.dot_dimension_numbers<[2], [2], [1], [1], [0, 0, 0, 1, 1, 1], [0], [0]>} : vector<2x8x16xbf16>, vector<2x8x16xbf16>, vector<2x8x8xf32> -> vector<2x8x8xf32>
    "tpu.trace_stop"() : () -> ()
    %cst_25 = arith.constant 2.500000e-01 : f32
    %54 = vector.broadcast %cst_25 : f32 to vector<2x8x8xf32>
    %55 = arith.mulf %53, %54 : vector<2x8x8xf32>
    %56 = vector.broadcast %35 : vector<2x1x8xf32> to vector<2x8x8xf32>
    %57 = arith.addf %55, %56 : vector<2x8x8xf32>
    %cst_26 = arith.constant dense<0xFF800000> : vector<2x8xf32>
    %58 = vector.multi_reduction <maximumf>, %57, %cst_26 [2] : vector<2x8x8xf32> to vector<2x8xf32>
    %59 = vector.shape_cast %58 : vector<2x8xf32> to vector<2x8x1xf32>
    %60 = vector.broadcast %59 : vector<2x8x1xf32> to vector<2x8x8xf32>
    %61 = arith.subf %57, %60 : vector<2x8x8xf32>
    %62 = math.exp %61 : vector<2x8x8xf32>
    %cst_27 = arith.constant dense<0.000000e+00> : vector<2x8xf32>
    %63 = vector.multi_reduction <add>, %62, %cst_27 [2] : vector<2x8x8xf32> to vector<2x8xf32>
    %64 = vector.shape_cast %63 : vector<2x8xf32> to vector<2x8x1xf32>
    %65 = tpu.reciprocal %64 : vector<2x8x1xf32> -> vector<2x8x1xf32>
    %66 = vector.broadcast %65 : vector<2x8x1xf32> to vector<2x8x8xf32>
    %67 = arith.mulf %62, %66 : vector<2x8x8xf32>
    %68 = arith.truncf %67 : vector<2x8x8xf32> to vector<2x8x8xbf16>
    "tpu.trace_start"() <{level = 10 : i32, message = "bqk,bkd->bqd"}> : () -> ()
    %cst_28 = arith.constant dense<0.000000e+00> : vector<2x8x16xf32>
    %69 = tpu.matmul %68, %52, %cst_28 {dimension_numbers = #tpu.dot_dimension_numbers<[2], [1], [1], [2], [0, 0, 0, 1, 1, 2], [0], [0]>} : vector<2x8x8xbf16>, vector<2x8x16xbf16>, vector<2x8x16xf32> -> vector<2x8x16xf32>
    "tpu.trace_stop"() : () -> ()
    %70 = vector.shape_cast %69 : vector<2x8x16xf32> to vector<16x16xf32>
    %71 = vector.extract_strided_slice %43 {offsets = [0, 16], sizes = [16, 16], strides = [1, 1]} : vector<16x96xf32> to vector<16x16xf32>
    %72 = vector.extract_strided_slice %43 {offsets = [0, 48], sizes = [16, 16], strides = [1, 1]} : vector<16x96xf32> to vector<16x16xf32>
    %73 = vector.extract_strided_slice %43 {offsets = [0, 80], sizes = [16, 16], strides = [1, 1]} : vector<16x96xf32> to vector<16x16xf32>
    %74 = vector.shape_cast %71 : vector<16x16xf32> to vector<2x8x16xf32>
    %75 = arith.truncf %74 : vector<2x8x16xf32> to vector<2x8x16xbf16>
    %76 = vector.shape_cast %72 : vector<16x16xf32> to vector<2x8x16xf32>
    %77 = arith.truncf %76 : vector<2x8x16xf32> to vector<2x8x16xbf16>
    %78 = vector.shape_cast %73 : vector<16x16xf32> to vector<2x8x16xf32>
    %79 = arith.truncf %78 : vector<2x8x16xf32> to vector<2x8x16xbf16>
    "tpu.trace_start"() <{level = 10 : i32, message = "bqd,bkd->bqk"}> : () -> ()
    %cst_29 = arith.constant dense<0.000000e+00> : vector<2x8x8xf32>
    %80 = tpu.matmul %75, %77, %cst_29 {dimension_numbers = #tpu.dot_dimension_numbers<[2], [2], [1], [1], [0, 0, 0, 1, 1, 1], [0], [0]>} : vector<2x8x16xbf16>, vector<2x8x16xbf16>, vector<2x8x8xf32> -> vector<2x8x8xf32>
    "tpu.trace_stop"() : () -> ()
    %cst_30 = arith.constant 2.500000e-01 : f32
    %81 = vector.broadcast %cst_30 : f32 to vector<2x8x8xf32>
    %82 = arith.mulf %80, %81 : vector<2x8x8xf32>
    %83 = vector.broadcast %35 : vector<2x1x8xf32> to vector<2x8x8xf32>
    %84 = arith.addf %82, %83 : vector<2x8x8xf32>
    %cst_31 = arith.constant dense<0xFF800000> : vector<2x8xf32>
    %85 = vector.multi_reduction <maximumf>, %84, %cst_31 [2] : vector<2x8x8xf32> to vector<2x8xf32>
    %86 = vector.shape_cast %85 : vector<2x8xf32> to vector<2x8x1xf32>
    %87 = vector.broadcast %86 : vector<2x8x1xf32> to vector<2x8x8xf32>
    %88 = arith.subf %84, %87 : vector<2x8x8xf32>
    %89 = math.exp %88 : vector<2x8x8xf32>
    %cst_32 = arith.constant dense<0.000000e+00> : vector<2x8xf32>
    %90 = vector.multi_reduction <add>, %89, %cst_32 [2] : vector<2x8x8xf32> to vector<2x8xf32>
    %91 = vector.shape_cast %90 : vector<2x8xf32> to vector<2x8x1xf32>
    %92 = tpu.reciprocal %91 : vector<2x8x1xf32> -> vector<2x8x1xf32>
    %93 = vector.broadcast %92 : vector<2x8x1xf32> to vector<2x8x8xf32>
    %94 = arith.mulf %89, %93 : vector<2x8x8xf32>
    %95 = arith.truncf %94 : vector<2x8x8xf32> to vector<2x8x8xbf16>
    "tpu.trace_start"() <{level = 10 : i32, message = "bqk,bkd->bqd"}> : () -> ()
    %cst_33 = arith.constant dense<0.000000e+00> : vector<2x8x16xf32>
    %96 = tpu.matmul %95, %79, %cst_33 {dimension_numbers = #tpu.dot_dimension_numbers<[2], [1], [1], [2], [0, 0, 0, 1, 1, 2], [0], [0]>} : vector<2x8x8xbf16>, vector<2x8x16xbf16>, vector<2x8x16xf32> -> vector<2x8x16xf32>
    "tpu.trace_stop"() : () -> ()
    %97 = vector.shape_cast %96 : vector<2x8x16xf32> to vector<16x16xf32>
    %98 = tpu.concatenate %70, %97 in 1 : vector<16x16xf32>, vector<16x16xf32> -> vector<16x32xf32>
    %c0_34 = arith.constant 0 : index
    %c0_35 = arith.constant 0 : index
    %c0_36 = arith.constant 0 : index
    %99 = vector.load %arg9[%c0_34, %c0_35, %c0_36] : memref<2x32x32xbf16, #tpu.memory_space<vmem>>, vector<1x32x32xbf16>
    %100 = vector.shape_cast %99 : vector<1x32x32xbf16> to vector<32x32xbf16>
    %c0_37 = arith.constant 0 : index
    %c0_38 = arith.constant 0 : index
    %c0_39 = arith.constant 0 : index
    %101 = vector.load %arg10[%c0_37, %c0_38, %c0_39] : memref<2x1x32xf32, #tpu.memory_space<vmem>>, vector<1x1x32xf32>
    %102 = vector.shape_cast %101 : vector<1x1x32xf32> to vector<1x32xf32>
    %103 = arith.truncf %98 : vector<16x32xf32> to vector<16x32xbf16>
    %cst_40 = arith.constant dense<0.000000e+00> : vector<16x32xf32>
    %104 = tpu.matmul %103, %100, %cst_40 {dimension_numbers = #tpu.dot_dimension_numbers<[1], [0], [0], [1], [0, 0, 1, 1], [], []>} : vector<16x32xbf16>, vector<32x32xbf16>, vector<16x32xf32> -> vector<16x32xf32>
    %105 = vector.broadcast %102 : vector<1x32xf32> to vector<16x32xf32>
    %106 = arith.addf %104, %105 : vector<16x32xf32>
    %107 = arith.addf %34, %106 : vector<16x32xf32>
    %c0_41 = arith.constant 0 : index
    %c0_42 = arith.constant 0 : index
    %c0_43 = arith.constant 0 : index
    %108 = vector.load %arg11[%c0_41, %c0_42, %c0_43] : memref<2x1x32xf32, #tpu.memory_space<vmem>>, vector<1x1x32xf32>
    %109 = vector.shape_cast %108 : vector<1x1x32xf32> to vector<1x32xf32>
    %c0_44 = arith.constant 0 : index
    %c0_45 = arith.constant 0 : index
    %c0_46 = arith.constant 0 : index
    %110 = vector.load %arg12[%c0_44, %c0_45, %c0_46] : memref<2x1x32xf32, #tpu.memory_space<vmem>>, vector<1x1x32xf32>
    %111 = vector.shape_cast %110 : vector<1x1x32xf32> to vector<1x32xf32>
    %cst_47 = arith.constant dense<0.000000e+00> : vector<16xf32>
    %112 = vector.multi_reduction <add>, %107, %cst_47 [1] : vector<16x32xf32> to vector<16xf32>
    %113 = vector.shape_cast %112 : vector<16xf32> to vector<16x1xf32>
    %cst_48 = arith.constant 3.200000e+01 : f32
    %114 = vector.broadcast %cst_48 : f32 to vector<16x1xf32>
    %115 = arith.divf %113, %114 : vector<16x1xf32>
    %116 = vector.broadcast %115 : vector<16x1xf32> to vector<16x32xf32>
    %117 = arith.subf %107, %116 : vector<16x32xf32>
    %118 = arith.mulf %117, %117 : vector<16x32xf32>
    %cst_49 = arith.constant dense<0.000000e+00> : vector<16xf32>
    %119 = vector.multi_reduction <add>, %118, %cst_49 [1] : vector<16x32xf32> to vector<16xf32>
    %120 = vector.shape_cast %119 : vector<16xf32> to vector<16x1xf32>
    %cst_50 = arith.constant 3.200000e+01 : f32
    %121 = vector.broadcast %cst_50 : f32 to vector<16x1xf32>
    %122 = arith.divf %120, %121 : vector<16x1xf32>
    %123 = vector.broadcast %115 : vector<16x1xf32> to vector<16x32xf32>
    %124 = arith.subf %107, %123 : vector<16x32xf32>
    %cst_51 = arith.constant 9.99999996E-13 : f32
    %125 = vector.broadcast %cst_51 : f32 to vector<16x1xf32>
    %126 = arith.addf %122, %125 : vector<16x1xf32>
    %127 = math.rsqrt %126 : vector<16x1xf32>
    %128 = vector.broadcast %127 : vector<16x1xf32> to vector<16x32xf32>
    %129 = arith.mulf %124, %128 : vector<16x32xf32>
    %130 = vector.broadcast %109 : vector<1x32xf32> to vector<16x32xf32>
    %131 = arith.mulf %129, %130 : vector<16x32xf32>
    %132 = vector.broadcast %111 : vector<1x32xf32> to vector<16x32xf32>
    %133 = arith.addf %131, %132 : vector<16x32xf32>
    %c0_52 = arith.constant 0 : index
    %c0_53 = arith.constant 0 : index
    %c0_54 = arith.constant 0 : index
    %134 = vector.load %arg13[%c0_52, %c0_53, %c0_54] : memref<2x32x64xbf16, #tpu.memory_space<vmem>>, vector<1x32x64xbf16>
    %135 = vector.shape_cast %134 : vector<1x32x64xbf16> to vector<32x64xbf16>
    %c0_55 = arith.constant 0 : index
    %c0_56 = arith.constant 0 : index
    %c0_57 = arith.constant 0 : index
    %136 = vector.load %arg14[%c0_55, %c0_56, %c0_57] : memref<2x1x64xf32, #tpu.memory_space<vmem>>, vector<1x1x64xf32>
    %137 = vector.shape_cast %136 : vector<1x1x64xf32> to vector<1x64xf32>
    %138 = arith.truncf %133 : vector<16x32xf32> to vector<16x32xbf16>
    %cst_58 = arith.constant dense<0.000000e+00> : vector<16x64xf32>
    %139 = tpu.matmul %138, %135, %cst_58 {dimension_numbers = #tpu.dot_dimension_numbers<[1], [0], [0], [1], [0, 0, 1, 1], [], []>} : vector<16x32xbf16>, vector<32x64xbf16>, vector<16x64xf32> -> vector<16x64xf32>
    %140 = vector.broadcast %137 : vector<1x64xf32> to vector<16x64xf32>
    %141 = arith.addf %139, %140 : vector<16x64xf32>
    %cst_59 = arith.constant 5.000000e-01 : f32
    %142 = vector.broadcast %cst_59 : f32 to vector<16x64xf32>
    %143 = arith.mulf %142, %141 : vector<16x64xf32>
    %cst_60 = arith.constant 4.471500e-02 : f32
    %144 = vector.broadcast %cst_60 : f32 to vector<16x64xf32>
    %145 = arith.mulf %144, %141 : vector<16x64xf32>
    %146 = arith.mulf %145, %141 : vector<16x64xf32>
    %147 = arith.mulf %146, %141 : vector<16x64xf32>
    %148 = arith.addf %141, %147 : vector<16x64xf32>
    %cst_61 = arith.constant 0.797884583 : f32
    %149 = vector.broadcast %cst_61 : f32 to vector<16x64xf32>
    %150 = arith.mulf %149, %148 : vector<16x64xf32>
    %151 = math.tanh %150 : vector<16x64xf32>
    %cst_62 = arith.constant 1.000000e+00 : f32
    %152 = vector.broadcast %cst_62 : f32 to vector<16x64xf32>
    %153 = arith.addf %152, %151 : vector<16x64xf32>
    %154 = arith.mulf %143, %153 : vector<16x64xf32>
    %c0_63 = arith.constant 0 : index
    %c0_64 = arith.constant 0 : index
    %c0_65 = arith.constant 0 : index
    %155 = vector.load %arg15[%c0_63, %c0_64, %c0_65] : memref<2x64x32xbf16, #tpu.memory_space<vmem>>, vector<1x64x32xbf16>
    %156 = vector.shape_cast %155 : vector<1x64x32xbf16> to vector<64x32xbf16>
    %c0_66 = arith.constant 0 : index
    %c0_67 = arith.constant 0 : index
    %c0_68 = arith.constant 0 : index
    %157 = vector.load %arg16[%c0_66, %c0_67, %c0_68] : memref<2x1x32xf32, #tpu.memory_space<vmem>>, vector<1x1x32xf32>
    %158 = vector.shape_cast %157 : vector<1x1x32xf32> to vector<1x32xf32>
    %159 = arith.truncf %154 : vector<16x64xf32> to vector<16x64xbf16>
    %cst_69 = arith.constant dense<0.000000e+00> : vector<16x32xf32>
    %160 = tpu.matmul %159, %156, %cst_69 {dimension_numbers = #tpu.dot_dimension_numbers<[1], [0], [0], [1], [0, 0, 1, 1], [], []>} : vector<16x64xbf16>, vector<64x32xbf16>, vector<16x32xf32> -> vector<16x32xf32>
    %161 = vector.broadcast %158 : vector<1x32xf32> to vector<16x32xf32>
    %162 = arith.addf %160, %161 : vector<16x32xf32>
    %163 = arith.addf %133, %162 : vector<16x32xf32>
    %c0_70 = arith.constant 0 : index
    %c0_71 = arith.constant 0 : index
    %c0_72 = arith.constant 0 : index
    %164 = vector.load %arg17[%c0_70, %c0_71, %c0_72] : memref<2x1x32xf32, #tpu.memory_space<vmem>>, vector<1x1x32xf32>
    %165 = vector.shape_cast %164 : vector<1x1x32xf32> to vector<1x32xf32>
    %c0_73 = arith.constant 0 : index
    %c0_74 = arith.constant 0 : index
    %c0_75 = arith.constant 0 : index
    %166 = vector.load %arg18[%c0_73, %c0_74, %c0_75] : memref<2x1x32xf32, #tpu.memory_space<vmem>>, vector<1x1x32xf32>
    %167 = vector.shape_cast %166 : vector<1x1x32xf32> to vector<1x32xf32>
    %cst_76 = arith.constant dense<0.000000e+00> : vector<16xf32>
    %168 = vector.multi_reduction <add>, %163, %cst_76 [1] : vector<16x32xf32> to vector<16xf32>
    %169 = vector.shape_cast %168 : vector<16xf32> to vector<16x1xf32>
    %cst_77 = arith.constant 3.200000e+01 : f32
    %170 = vector.broadcast %cst_77 : f32 to vector<16x1xf32>
    %171 = arith.divf %169, %170 : vector<16x1xf32>
    %172 = vector.broadcast %171 : vector<16x1xf32> to vector<16x32xf32>
    %173 = arith.subf %163, %172 : vector<16x32xf32>
    %174 = arith.mulf %173, %173 : vector<16x32xf32>
    %cst_78 = arith.constant dense<0.000000e+00> : vector<16xf32>
    %175 = vector.multi_reduction <add>, %174, %cst_78 [1] : vector<16x32xf32> to vector<16xf32>
    %176 = vector.shape_cast %175 : vector<16xf32> to vector<16x1xf32>
    %cst_79 = arith.constant 3.200000e+01 : f32
    %177 = vector.broadcast %cst_79 : f32 to vector<16x1xf32>
    %178 = arith.divf %176, %177 : vector<16x1xf32>
    %179 = vector.broadcast %171 : vector<16x1xf32> to vector<16x32xf32>
    %180 = arith.subf %163, %179 : vector<16x32xf32>
    %cst_80 = arith.constant 9.99999996E-13 : f32
    %181 = vector.broadcast %cst_80 : f32 to vector<16x1xf32>
    %182 = arith.addf %178, %181 : vector<16x1xf32>
    %183 = math.rsqrt %182 : vector<16x1xf32>
    %184 = vector.broadcast %183 : vector<16x1xf32> to vector<16x32xf32>
    %185 = arith.mulf %180, %184 : vector<16x32xf32>
    %186 = vector.broadcast %165 : vector<1x32xf32> to vector<16x32xf32>
    %187 = arith.mulf %185, %186 : vector<16x32xf32>
    %188 = vector.broadcast %167 : vector<1x32xf32> to vector<16x32xf32>
    %189 = arith.addf %187, %188 : vector<16x32xf32>
    %c1 = arith.constant 1 : index
    %c0_81 = arith.constant 0 : index
    %c0_82 = arith.constant 0 : index
    %190 = vector.load %arg7[%c1, %c0_81, %c0_82] : memref<2x32x96xbf16, #tpu.memory_space<vmem>>, vector<1x32x96xbf16>
    %191 = vector.shape_cast %190 : vector<1x32x96xbf16> to vector<32x96xbf16>
    %c1_83 = arith.constant 1 : index
    %c0_84 = arith.constant 0 : index
    %c0_85 = arith.constant 0 : index
    %192 = vector.load %arg8[%c1_83, %c0_84, %c0_85] : memref<2x1x96xf32, #tpu.memory_space<vmem>>, vector<1x1x96xf32>
    %193 = vector.shape_cast %192 : vector<1x1x96xf32> to vector<1x96xf32>
    %194 = arith.truncf %189 : vector<16x32xf32> to vector<16x32xbf16>
    %cst_86 = arith.constant dense<0.000000e+00> : vector<16x96xf32>
    %195 = tpu.matmul %194, %191, %cst_86 {dimension_numbers = #tpu.dot_dimension_numbers<[1], [0], [0], [1], [0, 0, 1, 1], [], []>} : vector<16x32xbf16>, vector<32x96xbf16>, vector<16x96xf32> -> vector<16x96xf32>
    %196 = vector.broadcast %193 : vector<1x96xf32> to vector<16x96xf32>
    %197 = arith.addf %195, %196 : vector<16x96xf32>
    %198 = vector.extract_strided_slice %197 {offsets = [0, 0], sizes = [16, 16], strides = [1, 1]} : vector<16x96xf32> to vector<16x16xf32>
    %199 = vector.extract_strided_slice %197 {offsets = [0, 32], sizes = [16, 16], strides = [1, 1]} : vector<16x96xf32> to vector<16x16xf32>
    %200 = vector.extract_strided_slice %197 {offsets = [0, 64], sizes = [16, 16], strides = [1, 1]} : vector<16x96xf32> to vector<16x16xf32>
    %201 = vector.shape_cast %198 : vector<16x16xf32> to vector<2x8x16xf32>
    %202 = arith.truncf %201 : vector<2x8x16xf32> to vector<2x8x16xbf16>
    %203 = vector.shape_cast %199 : vector<16x16xf32> to vector<2x8x16xf32>
    %204 = arith.truncf %203 : vector<2x8x16xf32> to vector<2x8x16xbf16>
    %205 = vector.shape_cast %200 : vector<16x16xf32> to vector<2x8x16xf32>
    %206 = arith.truncf %205 : vector<2x8x16xf32> to vector<2x8x16xbf16>
    "tpu.trace_start"() <{level = 10 : i32, message = "bqd,bkd->bqk"}> : () -> ()
    %cst_87 = arith.constant dense<0.000000e+00> : vector<2x8x8xf32>
    %207 = tpu.matmul %202, %204, %cst_87 {dimension_numbers = #tpu.dot_dimension_numbers<[2], [2], [1], [1], [0, 0, 0, 1, 1, 1], [0], [0]>} : vector<2x8x16xbf16>, vector<2x8x16xbf16>, vector<2x8x8xf32> -> vector<2x8x8xf32>
    "tpu.trace_stop"() : () -> ()
    %cst_88 = arith.constant 2.500000e-01 : f32
    %208 = vector.broadcast %cst_88 : f32 to vector<2x8x8xf32>
    %209 = arith.mulf %207, %208 : vector<2x8x8xf32>
    %210 = vector.broadcast %35 : vector<2x1x8xf32> to vector<2x8x8xf32>
    %211 = arith.addf %209, %210 : vector<2x8x8xf32>
    %cst_89 = arith.constant dense<0xFF800000> : vector<2x8xf32>
    %212 = vector.multi_reduction <maximumf>, %211, %cst_89 [2] : vector<2x8x8xf32> to vector<2x8xf32>
    %213 = vector.shape_cast %212 : vector<2x8xf32> to vector<2x8x1xf32>
    %214 = vector.broadcast %213 : vector<2x8x1xf32> to vector<2x8x8xf32>
    %215 = arith.subf %211, %214 : vector<2x8x8xf32>
    %216 = math.exp %215 : vector<2x8x8xf32>
    %cst_90 = arith.constant dense<0.000000e+00> : vector<2x8xf32>
    %217 = vector.multi_reduction <add>, %216, %cst_90 [2] : vector<2x8x8xf32> to vector<2x8xf32>
    %218 = vector.shape_cast %217 : vector<2x8xf32> to vector<2x8x1xf32>
    %219 = tpu.reciprocal %218 : vector<2x8x1xf32> -> vector<2x8x1xf32>
    %220 = vector.broadcast %219 : vector<2x8x1xf32> to vector<2x8x8xf32>
    %221 = arith.mulf %216, %220 : vector<2x8x8xf32>
    %222 = arith.truncf %221 : vector<2x8x8xf32> to vector<2x8x8xbf16>
    "tpu.trace_start"() <{level = 10 : i32, message = "bqk,bkd->bqd"}> : () -> ()
    %cst_91 = arith.constant dense<0.000000e+00> : vector<2x8x16xf32>
    %223 = tpu.matmul %222, %206, %cst_91 {dimension_numbers = #tpu.dot_dimension_numbers<[2], [1], [1], [2], [0, 0, 0, 1, 1, 2], [0], [0]>} : vector<2x8x8xbf16>, vector<2x8x16xbf16>, vector<2x8x16xf32> -> vector<2x8x16xf32>
    "tpu.trace_stop"() : () -> ()
    %224 = vector.shape_cast %223 : vector<2x8x16xf32> to vector<16x16xf32>
    %225 = vector.extract_strided_slice %197 {offsets = [0, 16], sizes = [16, 16], strides = [1, 1]} : vector<16x96xf32> to vector<16x16xf32>
    %226 = vector.extract_strided_slice %197 {offsets = [0, 48], sizes = [16, 16], strides = [1, 1]} : vector<16x96xf32> to vector<16x16xf32>
    %227 = vector.extract_strided_slice %197 {offsets = [0, 80], sizes = [16, 16], strides = [1, 1]} : vector<16x96xf32> to vector<16x16xf32>
    %228 = vector.shape_cast %225 : vector<16x16xf32> to vector<2x8x16xf32>
    %229 = arith.truncf %228 : vector<2x8x16xf32> to vector<2x8x16xbf16>
    %230 = vector.shape_cast %226 : vector<16x16xf32> to vector<2x8x16xf32>
    %231 = arith.truncf %230 : vector<2x8x16xf32> to vector<2x8x16xbf16>
    %232 = vector.shape_cast %227 : vector<16x16xf32> to vector<2x8x16xf32>
    %233 = arith.truncf %232 : vector<2x8x16xf32> to vector<2x8x16xbf16>
    "tpu.trace_start"() <{level = 10 : i32, message = "bqd,bkd->bqk"}> : () -> ()
    %cst_92 = arith.constant dense<0.000000e+00> : vector<2x8x8xf32>
    %234 = tpu.matmul %229, %231, %cst_92 {dimension_numbers = #tpu.dot_dimension_numbers<[2], [2], [1], [1], [0, 0, 0, 1, 1, 1], [0], [0]>} : vector<2x8x16xbf16>, vector<2x8x16xbf16>, vector<2x8x8xf32> -> vector<2x8x8xf32>
    "tpu.trace_stop"() : () -> ()
    %cst_93 = arith.constant 2.500000e-01 : f32
    %235 = vector.broadcast %cst_93 : f32 to vector<2x8x8xf32>
    %236 = arith.mulf %234, %235 : vector<2x8x8xf32>
    %237 = vector.broadcast %35 : vector<2x1x8xf32> to vector<2x8x8xf32>
    %238 = arith.addf %236, %237 : vector<2x8x8xf32>
    %cst_94 = arith.constant dense<0xFF800000> : vector<2x8xf32>
    %239 = vector.multi_reduction <maximumf>, %238, %cst_94 [2] : vector<2x8x8xf32> to vector<2x8xf32>
    %240 = vector.shape_cast %239 : vector<2x8xf32> to vector<2x8x1xf32>
    %241 = vector.broadcast %240 : vector<2x8x1xf32> to vector<2x8x8xf32>
    %242 = arith.subf %238, %241 : vector<2x8x8xf32>
    %243 = math.exp %242 : vector<2x8x8xf32>
    %cst_95 = arith.constant dense<0.000000e+00> : vector<2x8xf32>
    %244 = vector.multi_reduction <add>, %243, %cst_95 [2] : vector<2x8x8xf32> to vector<2x8xf32>
    %245 = vector.shape_cast %244 : vector<2x8xf32> to vector<2x8x1xf32>
    %246 = tpu.reciprocal %245 : vector<2x8x1xf32> -> vector<2x8x1xf32>
    %247 = vector.broadcast %246 : vector<2x8x1xf32> to vector<2x8x8xf32>
    %248 = arith.mulf %243, %247 : vector<2x8x8xf32>
    %249 = arith.truncf %248 : vector<2x8x8xf32> to vector<2x8x8xbf16>
    "tpu.trace_start"() <{level = 10 : i32, message = "bqk,bkd->bqd"}> : () -> ()
    %cst_96 = arith.constant dense<0.000000e+00> : vector<2x8x16xf32>
    %250 = tpu.matmul %249, %233, %cst_96 {dimension_numbers = #tpu.dot_dimension_numbers<[2], [1], [1], [2], [0, 0, 0, 1, 1, 2], [0], [0]>} : vector<2x8x8xbf16>, vector<2x8x16xbf16>, vector<2x8x16xf32> -> vector<2x8x16xf32>
    "tpu.trace_stop"() : () -> ()
    %251 = vector.shape_cast %250 : vector<2x8x16xf32> to vector<16x16xf32>
    %252 = tpu.concatenate %224, %251 in 1 : vector<16x16xf32>, vector<16x16xf32> -> vector<16x32xf32>
    %c1_97 = arith.constant 1 : index
    %c0_98 = arith.constant 0 : index
    %c0_99 = arith.constant 0 : index
    %253 = vector.load %arg9[%c1_97, %c0_98, %c0_99] : memref<2x32x32xbf16, #tpu.memory_space<vmem>>, vector<1x32x32xbf16>
    %254 = vector.shape_cast %253 : vector<1x32x32xbf16> to vector<32x32xbf16>
    %c1_100 = arith.constant 1 : index
    %c0_101 = arith.constant 0 : index
    %c0_102 = arith.constant 0 : index
    %255 = vector.load %arg10[%c1_100, %c0_101, %c0_102] : memref<2x1x32xf32, #tpu.memory_space<vmem>>, vector<1x1x32xf32>
    %256 = vector.shape_cast %255 : vector<1x1x32xf32> to vector<1x32xf32>
    %257 = arith.truncf %252 : vector<16x32xf32> to vector<16x32xbf16>
    %cst_103 = arith.constant dense<0.000000e+00> : vector<16x32xf32>
    %258 = tpu.matmul %257, %254, %cst_103 {dimension_numbers = #tpu.dot_dimension_numbers<[1], [0], [0], [1], [0, 0, 1, 1], [], []>} : vector<16x32xbf16>, vector<32x32xbf16>, vector<16x32xf32> -> vector<16x32xf32>
    %259 = vector.broadcast %256 : vector<1x32xf32> to vector<16x32xf32>
    %260 = arith.addf %258, %259 : vector<16x32xf32>
    %261 = arith.addf %189, %260 : vector<16x32xf32>
    %c1_104 = arith.constant 1 : index
    %c0_105 = arith.constant 0 : index
    %c0_106 = arith.constant 0 : index
    %262 = vector.load %arg11[%c1_104, %c0_105, %c0_106] : memref<2x1x32xf32, #tpu.memory_space<vmem>>, vector<1x1x32xf32>
    %263 = vector.shape_cast %262 : vector<1x1x32xf32> to vector<1x32xf32>
    %c1_107 = arith.constant 1 : index
    %c0_108 = arith.constant 0 : index
    %c0_109 = arith.constant 0 : index
    %264 = vector.load %arg12[%c1_107, %c0_108, %c0_109] : memref<2x1x32xf32, #tpu.memory_space<vmem>>, vector<1x1x32xf32>
    %265 = vector.shape_cast %264 : vector<1x1x32xf32> to vector<1x32xf32>
    %cst_110 = arith.constant dense<0.000000e+00> : vector<16xf32>
    %266 = vector.multi_reduction <add>, %261, %cst_110 [1] : vector<16x32xf32> to vector<16xf32>
    %267 = vector.shape_cast %266 : vector<16xf32> to vector<16x1xf32>
    %cst_111 = arith.constant 3.200000e+01 : f32
    %268 = vector.broadcast %cst_111 : f32 to vector<16x1xf32>
    %269 = arith.divf %267, %268 : vector<16x1xf32>
    %270 = vector.broadcast %269 : vector<16x1xf32> to vector<16x32xf32>
    %271 = arith.subf %261, %270 : vector<16x32xf32>
    %272 = arith.mulf %271, %271 : vector<16x32xf32>
    %cst_112 = arith.constant dense<0.000000e+00> : vector<16xf32>
    %273 = vector.multi_reduction <add>, %272, %cst_112 [1] : vector<16x32xf32> to vector<16xf32>
    %274 = vector.shape_cast %273 : vector<16xf32> to vector<16x1xf32>
    %cst_113 = arith.constant 3.200000e+01 : f32
    %275 = vector.broadcast %cst_113 : f32 to vector<16x1xf32>
    %276 = arith.divf %274, %275 : vector<16x1xf32>
    %277 = vector.broadcast %269 : vector<16x1xf32> to vector<16x32xf32>
    %278 = arith.subf %261, %277 : vector<16x32xf32>
    %cst_114 = arith.constant 9.99999996E-13 : f32
    %279 = vector.broadcast %cst_114 : f32 to vector<16x1xf32>
    %280 = arith.addf %276, %279 : vector<16x1xf32>
    %281 = math.rsqrt %280 : vector<16x1xf32>
    %282 = vector.broadcast %281 : vector<16x1xf32> to vector<16x32xf32>
    %283 = arith.mulf %278, %282 : vector<16x32xf32>
    %284 = vector.broadcast %263 : vector<1x32xf32> to vector<16x32xf32>
    %285 = arith.mulf %283, %284 : vector<16x32xf32>
    %286 = vector.broadcast %265 : vector<1x32xf32> to vector<16x32xf32>
    %287 = arith.addf %285, %286 : vector<16x32xf32>
    %c1_115 = arith.constant 1 : index
    %c0_116 = arith.constant 0 : index
    %c0_117 = arith.constant 0 : index
    %288 = vector.load %arg13[%c1_115, %c0_116, %c0_117] : memref<2x32x64xbf16, #tpu.memory_space<vmem>>, vector<1x32x64xbf16>
    %289 = vector.shape_cast %288 : vector<1x32x64xbf16> to vector<32x64xbf16>
    %c1_118 = arith.constant 1 : index
    %c0_119 = arith.constant 0 : index
    %c0_120 = arith.constant 0 : index
    %290 = vector.load %arg14[%c1_118, %c0_119, %c0_120] : memref<2x1x64xf32, #tpu.memory_space<vmem>>, vector<1x1x64xf32>
    %291 = vector.shape_cast %290 : vector<1x1x64xf32> to vector<1x64xf32>
    %292 = arith.truncf %287 : vector<16x32xf32> to vector<16x32xbf16>
    %cst_121 = arith.constant dense<0.000000e+00> : vector<16x64xf32>
    %293 = tpu.matmul %292, %289, %cst_121 {dimension_numbers = #tpu.dot_dimension_numbers<[1], [0], [0], [1], [0, 0, 1, 1], [], []>} : vector<16x32xbf16>, vector<32x64xbf16>, vector<16x64xf32> -> vector<16x64xf32>
    %294 = vector.broadcast %291 : vector<1x64xf32> to vector<16x64xf32>
    %295 = arith.addf %293, %294 : vector<16x64xf32>
    %cst_122 = arith.constant 5.000000e-01 : f32
    %296 = vector.broadcast %cst_122 : f32 to vector<16x64xf32>
    %297 = arith.mulf %296, %295 : vector<16x64xf32>
    %cst_123 = arith.constant 4.471500e-02 : f32
    %298 = vector.broadcast %cst_123 : f32 to vector<16x64xf32>
    %299 = arith.mulf %298, %295 : vector<16x64xf32>
    %300 = arith.mulf %299, %295 : vector<16x64xf32>
    %301 = arith.mulf %300, %295 : vector<16x64xf32>
    %302 = arith.addf %295, %301 : vector<16x64xf32>
    %cst_124 = arith.constant 0.797884583 : f32
    %303 = vector.broadcast %cst_124 : f32 to vector<16x64xf32>
    %304 = arith.mulf %303, %302 : vector<16x64xf32>
    %305 = math.tanh %304 : vector<16x64xf32>
    %cst_125 = arith.constant 1.000000e+00 : f32
    %306 = vector.broadcast %cst_125 : f32 to vector<16x64xf32>
    %307 = arith.addf %306, %305 : vector<16x64xf32>
    %308 = arith.mulf %297, %307 : vector<16x64xf32>
    %c1_126 = arith.constant 1 : index
    %c0_127 = arith.constant 0 : index
    %c0_128 = arith.constant 0 : index
    %309 = vector.load %arg15[%c1_126, %c0_127, %c0_128] : memref<2x64x32xbf16, #tpu.memory_space<vmem>>, vector<1x64x32xbf16>
    %310 = vector.shape_cast %309 : vector<1x64x32xbf16> to vector<64x32xbf16>
    %c1_129 = arith.constant 1 : index
    %c0_130 = arith.constant 0 : index
    %c0_131 = arith.constant 0 : index
    %311 = vector.load %arg16[%c1_129, %c0_130, %c0_131] : memref<2x1x32xf32, #tpu.memory_space<vmem>>, vector<1x1x32xf32>
    %312 = vector.shape_cast %311 : vector<1x1x32xf32> to vector<1x32xf32>
    %313 = arith.truncf %308 : vector<16x64xf32> to vector<16x64xbf16>
    %cst_132 = arith.constant dense<0.000000e+00> : vector<16x32xf32>
    %314 = tpu.matmul %313, %310, %cst_132 {dimension_numbers = #tpu.dot_dimension_numbers<[1], [0], [0], [1], [0, 0, 1, 1], [], []>} : vector<16x64xbf16>, vector<64x32xbf16>, vector<16x32xf32> -> vector<16x32xf32>
    %315 = vector.broadcast %312 : vector<1x32xf32> to vector<16x32xf32>
    %316 = arith.addf %314, %315 : vector<16x32xf32>
    %317 = arith.addf %287, %316 : vector<16x32xf32>
    %c1_133 = arith.constant 1 : index
    %c0_134 = arith.constant 0 : index
    %c0_135 = arith.constant 0 : index
    %318 = vector.load %arg17[%c1_133, %c0_134, %c0_135] : memref<2x1x32xf32, #tpu.memory_space<vmem>>, vector<1x1x32xf32>
    %319 = vector.shape_cast %318 : vector<1x1x32xf32> to vector<1x32xf32>
    %c1_136 = arith.constant 1 : index
    %c0_137 = arith.constant 0 : index
    %c0_138 = arith.constant 0 : index
    %320 = vector.load %arg18[%c1_136, %c0_137, %c0_138] : memref<2x1x32xf32, #tpu.memory_space<vmem>>, vector<1x1x32xf32>
    %321 = vector.shape_cast %320 : vector<1x1x32xf32> to vector<1x32xf32>
    %cst_139 = arith.constant dense<0.000000e+00> : vector<16xf32>
    %322 = vector.multi_reduction <add>, %317, %cst_139 [1] : vector<16x32xf32> to vector<16xf32>
    %323 = vector.shape_cast %322 : vector<16xf32> to vector<16x1xf32>
    %cst_140 = arith.constant 3.200000e+01 : f32
    %324 = vector.broadcast %cst_140 : f32 to vector<16x1xf32>
    %325 = arith.divf %323, %324 : vector<16x1xf32>
    %326 = vector.broadcast %325 : vector<16x1xf32> to vector<16x32xf32>
    %327 = arith.subf %317, %326 : vector<16x32xf32>
    %328 = arith.mulf %327, %327 : vector<16x32xf32>
    %cst_141 = arith.constant dense<0.000000e+00> : vector<16xf32>
    %329 = vector.multi_reduction <add>, %328, %cst_141 [1] : vector<16x32xf32> to vector<16xf32>
    %330 = vector.shape_cast %329 : vector<16xf32> to vector<16x1xf32>
    %cst_142 = arith.constant 3.200000e+01 : f32
    %331 = vector.broadcast %cst_142 : f32 to vector<16x1xf32>
    %332 = arith.divf %330, %331 : vector<16x1xf32>
    %333 = vector.broadcast %325 : vector<16x1xf32> to vector<16x32xf32>
    %334 = arith.subf %317, %333 : vector<16x32xf32>
    %cst_143 = arith.constant 9.99999996E-13 : f32
    %335 = vector.broadcast %cst_143 : f32 to vector<16x1xf32>
    %336 = arith.addf %332, %335 : vector<16x1xf32>
    %337 = math.rsqrt %336 : vector<16x1xf32>
    %338 = vector.broadcast %337 : vector<16x1xf32> to vector<16x32xf32>
    %339 = arith.mulf %334, %338 : vector<16x32xf32>
    %340 = vector.broadcast %319 : vector<1x32xf32> to vector<16x32xf32>
    %341 = arith.mulf %339, %340 : vector<16x32xf32>
    %342 = vector.broadcast %321 : vector<1x32xf32> to vector<16x32xf32>
    %343 = arith.addf %341, %342 : vector<16x32xf32>
    %c0_144 = arith.constant 0 : index
    %c0_145 = arith.constant 0 : index
    %344 = vector.load %arg19[%c0_144, %c0_145] : memref<32x128xf32, #tpu.memory_space<vmem>>, vector<32x128xf32>
    %cst_146 = arith.constant dense<0.000000e+00> : vector<16x128xf32>
    %345 = tpu.matmul %343, %344, %cst_146 {dimension_numbers = #tpu.dot_dimension_numbers<[1], [0], [0], [1], [0, 0, 1, 1], [], []>} : vector<16x32xf32>, vector<32x128xf32>, vector<16x128xf32> -> vector<16x128xf32>
    %c0_147 = arith.constant 0 : index
    %c0_148 = arith.constant 0 : index
    %346 = vector.load %arg20[%c0_147, %c0_148] : memref<1x128xf32, #tpu.memory_space<vmem>>, vector<1x128xf32>
    %347 = vector.broadcast %346 : vector<1x128xf32> to vector<16x128xf32>
    %348 = arith.addf %345, %347 : vector<16x128xf32>
    %c0_149 = arith.constant 0 : index
    %c0_150 = arith.constant 0 : index
    %349 = vector.load %arg21[%c0_149, %c0_150] : memref<16x128xf32, #tpu.memory_space<vmem>>, vector<16x128xf32>
    tpu.vector_store %arg21[%c0_149, %c0_150], %348 {strides = array<i32>} : memref<16x128xf32, #tpu.memory_space<vmem>>, vector<16x128xf32>,
    %c0_151 = arith.constant 0 : index
    %c0_152 = arith.constant 0 : index
    %350 = vector.load %arg2[%c0_151, %c0_152] : memref<16x1xi32, #tpu.memory_space<vmem>>, vector<16x1xi32>
    %cst_153 = arith.constant dense<0xFF800000> : vector<16xf32>
    %351 = vector.multi_reduction <maximumf>, %348, %cst_153 [1] : vector<16x128xf32> to vector<16xf32>
    %352 = vector.shape_cast %351 : vector<16xf32> to vector<16x1xf32>
    %353 = vector.broadcast %352 : vector<16x1xf32> to vector<16x128xf32>
    %354 = arith.subf %348, %353 : vector<16x128xf32>
    %355 = math.exp %354 : vector<16x128xf32>
    %cst_154 = arith.constant dense<0.000000e+00> : vector<16xf32>
    %356 = vector.multi_reduction <add>, %355, %cst_154 [1] : vector<16x128xf32> to vector<16xf32>
    %357 = vector.shape_cast %356 : vector<16xf32> to vector<16x1xf32>
    %358 = math.log %357 : vector<16x1xf32>
    %359 = arith.addf %358, %352 : vector<16x1xf32>
    %c-100_i32 = arith.constant -100 : i32
    %360 = vector.broadcast %c-100_i32 : i32 to vector<16x1xi32>
    %361 = arith.cmpi ne, %350, %360 : vector<16x1xi32>
    %c0_i32 = arith.constant 0 : i32
    %362 = vector.broadcast %c0_i32 : i32 to vector<16x1xi32>
    %363 = arith.select %361, %350, %362 : vector<16x1xi1>, vector<16x1xi32>
    %364 = tpu.iota {dimensions = array<i32: 1>} : vector<16x128xi32>
    %365 = vector.broadcast %363 : vector<16x1xi32> to vector<16x128xi32>
    %366 = arith.cmpi eq, %364, %365 : vector<16x128xi32>
    %367 = arith.extui %366 : vector<16x128xi1> to vector<16x128xi32>
    %368 = arith.sitofp %367 : vector<16x128xi32> to vector<16x128xf32>
    %369 = arith.mulf %348, %368 : vector<16x128xf32>
    %cst_155 = arith.constant dense<0.000000e+00> : vector<16xf32>
    %370 = vector.multi_reduction <add>, %369, %cst_155 [1] : vector<16x128xf32> to vector<16xf32>
    %371 = vector.shape_cast %370 : vector<16xf32> to vector<16x1xf32>
    %372 = arith.extui %361 : vector<16x1xi1> to vector<16x1xi32>
    %373 = arith.sitofp %372 : vector<16x1xi32> to vector<16x1xf32>
    %374 = arith.subf %359, %371 : vector<16x1xf32>
    %375 = arith.mulf %374, %373 : vector<16x1xf32>
    %cst_156 = arith.constant dense<0.000000e+00> : vector<1xf32>
    %376 = vector.multi_reduction <add>, %375, %cst_156 [0] : vector<16x1xf32> to vector<1xf32>
    %377 = vector.shape_cast %376 : vector<1xf32> to vector<1x1xf32>
    %cst_157 = arith.constant dense<0.000000e+00> : vector<1xf32>
    %378 = vector.multi_reduction <add>, %373, %cst_157 [0] : vector<16x1xf32> to vector<1xf32>
    %379 = vector.shape_cast %378 : vector<1xf32> to vector<1x1xf32>
    %cst_158 = arith.constant 1.000000e+00 : f32
    %380 = vector.broadcast %cst_158 : f32 to vector<1x1xf32>
    %381 = arith.maximumf %379, %380 : vector<1x1xf32>
    %382 = arith.divf %377, %381 : vector<1x1xf32>
    %c0_159 = arith.constant 0 : index
    %c0_160 = arith.constant 0 : index
    %383 = vector.load %arg22[%c0_159, %c0_160] : memref<1x1xf32, #tpu.memory_space<vmem>>, vector<1x1xf32>
    tpu.vector_store %arg22[%c0_159, %c0_160], %382 {strides = array<i32>} : memref<1x1xf32, #tpu.memory_space<vmem>>, vector<1x1xf32>,
    return
  }
}

</mosaic_0001>

<llo_original>
// kernel: nug_forward.1
$region0: #{nug_forward.1}
  #allocation0 [shape = 'u32[]', space=smem, size = 0x4, offset = 0x4, fixed_abs, tag = 'smem constant byte address 0x4 - core index']
  #allocation1 [shape = 'u32[72,128]{1,0:T(1,128)}', space=vmem, size = 0x9000, scoped, tag = 'internal scratch']
  %s0 = inlined_call_operand.vmem [shape: s32[16,1], index: 0, kind: input, shape index: {}]
  %s1 = inlined_call_operand.vmem [shape: f32[2,1,8], index: 1, kind: input, shape index: {}]
  %s2 = inlined_call_operand.vmem [shape: s32[16,1], index: 2, kind: input, shape index: {}]
  %s3 = inlined_call_operand.vmem [shape: f32[128,32], index: 3, kind: input, shape index: {}]
  %s4 = inlined_call_operand.vmem [shape: f32[8,32], index: 4, kind: input, shape index: {}]
  %s5 = inlined_call_operand.vmem [shape: f32[1,32], index: 5, kind: input, shape index: {}]
  %s6 = inlined_call_operand.vmem [shape: f32[1,32], index: 6, kind: input, shape index: {}]
  %s7 = inlined_call_operand.vmem [shape: bf16[2,32,96], index: 7, kind: input, shape index: {}]
  %s8 = inlined_call_operand.vmem [shape: f32[2,1,96], index: 8, kind: input, shape index: {}]
  %s9 = inlined_call_operand.vmem [shape: bf16[2,32,32], index: 9, kind: input, shape index: {}]
  %s10 = inlined_call_operand.vmem [shape: f32[2,1,32], index: 10, kind: input, shape index: {}]
  %s11 = inlined_call_operand.vmem [shape: f32[2,1,32], index: 11, kind: input, shape index: {}]
  %s12 = inlined_call_operand.vmem [shape: f32[2,1,32], index: 12, kind: input, shape index: {}]
  %s13 = inlined_call_operand.vmem [shape: bf16[2,32,64], index: 13, kind: input, shape index: {}]
  %s14 = inlined_call_operand.vmem [shape: f32[2,1,64], index: 14, kind: input, shape index: {}]
  %s15 = inlined_call_operand.vmem [shape: bf16[2,64,32], index: 15, kind: input, shape index: {}]
  %s16 = inlined_call_operand.vmem [shape: f32[2,1,32], index: 16, kind: input, shape index: {}]
  %s17 = inlined_call_operand.vmem [shape: f32[2,1,32], index: 17, kind: input, shape index: {}]
  %s18 = inlined_call_operand.vmem [shape: f32[2,1,32], index: 18, kind: input, shape index: {}]
  %s19 = inlined_call_operand.vmem [shape: f32[32,128], index: 19, kind: input, shape index: {}]
  %s20 = inlined_call_operand.vmem [shape: f32[1,128], index: 20, kind: input, shape index: {}]
  %s21 = inlined_call_operand.vmem [shape: f32[16,128], index: 21, kind: output, shape index: {0}]
  %s22 = inlined_call_operand.hbm [shape: f32[1,1], index: 22, kind: output, shape index: {1}]
  %23 = xla_tuple %s21, %s22
  %s24 = sld [smem:[#allocation0]]
  $region102: #{nug_forward.1} parent=0
    _
  %s26 = ssub.s32 1, %s24
  %s27 = scalar_select 0, %s26, %s24
  $region1: #{nug_forward.1} parent=0
    #allocation2 [shape = 'u8[512]{0}', space=vmem, size = 0x400, scoped, tag = 'output window, operand 1, single buffered']
    #allocation3 [shape = 's32[1]{0}', space=sflag, size = 0x4, scoped, tag = 'scoped memory for nug_forward.1']
    %28 = vsyncpa [#allocation3], 0
    // Predicated region
    $region2: #{nug_forward.1} parent=1 // pred_check
      _
    $region3: #{nug_forward.1} parent=1 // pred_check_branch
      %30 = sbr.rel (0) target = $region5
    $region4: #{nug_forward.1} parent=1 // pred_region
      _
    $region5: #{nug_forward.1} parent=1 // pred_fallthru
      _
    // Predicated region
    $region6: #{nug_forward.1} parent=1 // pred_check
      _
    $region7: #{nug_forward.1} parent=1 // pred_check_branch
      %32 = sbr.rel (0) target = $region9
    $region8: #{nug_forward.1} parent=1 // pred_region
      _
    $region9: #{nug_forward.1} parent=1 // pred_fallthru
      _
    // Predicated region
    $region10: #{nug_forward.1} parent=1 // pred_check
      _
    $region11: #{nug_forward.1} parent=1 // pred_check_branch
      %34 = sbr.rel (0) target = $region13
    $region12: #{nug_forward.1} parent=1 // pred_region
      _
    $region13: #{nug_forward.1} parent=1 // pred_fallthru
      _
    // Predicated region
    $region14: #{nug_forward.1} parent=1 // pred_check
      _
    $region15: #{nug_forward.1} parent=1 // pred_check_branch
      %36 = sbr.rel (0) target = $region17
    $region16: #{nug_forward.1} parent=1 // pred_region
      _
    $region17: #{nug_forward.1} parent=1 // pred_fallthru
      _
    // Predicated region
    $region18: #{nug_forward.1} parent=1 // pred_check
      _
    $region19: #{nug_forward.1} parent=1 // pred_check_branch
      %38 = sbr.rel (0) target = $region21
    $region20: #{nug_forward.1} parent=1 // pred_region
      _
    $region21: #{nug_forward.1} parent=1 // pred_fallthru
      _
    // Predicated region
    $region22: #{nug_forward.1} parent=1 // pred_check
      _
    $region23: #{nug_forward.1} parent=1 // pred_check_branch
      %40 = sbr.rel (0) target = $region25
    $region24: #{nug_forward.1} parent=1 // pred_region
      _
    $region25: #{nug_forward.1} parent=1 // pred_fallthru
      _
    // Predicated region
    $region26: #{nug_forward.1} parent=1 // pred_check
      _
    $region27: #{nug_forward.1} parent=1 // pred_check_branch
      %42 = sbr.rel (0) target = $region29
    $region28: #{nug_forward.1} parent=1 // pred_region
      _
    $region29: #{nug_forward.1} parent=1 // pred_fallthru
      _
    // Predicated region
    $region30: #{nug_forward.1} parent=1 // pred_check
      _
    $region31: #{nug_forward.1} parent=1 // pred_check_branch
      %44 = sbr.rel (0) target = $region33
    $region32: #{nug_forward.1} parent=1 // pred_region
      _
    $region33: #{nug_forward.1} parent=1 // pred_fallthru
      _
    // Predicated region
    $region34: #{nug_forward.1} parent=1 // pred_check
      _
    $region35: #{nug_forward.1} parent=1 // pred_check_branch
      %46 = sbr.rel (0) target = $region37
    $region36: #{nug_forward.1} parent=1 // pred_region
      _
    $region37: #{nug_forward.1} parent=1 // pred_fallthru
      _
    // Predicated region
    $region38: #{nug_forward.1} parent=1 // pred_check
      _
    $region39: #{nug_forward.1} parent=1 // pred_check_branch
      %48 = sbr.rel (0) target = $region41
    $region40: #{nug_forward.1} parent=1 // pred_region
      _
    $region41: #{nug_forward.1} parent=1 // pred_fallthru
      _
    // Predicated region
    $region42: #{nug_forward.1} parent=1 // pred_check
      _
    $region43: #{nug_forward.1} parent=1 // pred_check_branch
      %50 = sbr.rel (0) target = $region45
    $region44: #{nug_forward.1} parent=1 // pred_region
      _
    $region45: #{nug_forward.1} parent=1 // pred_fallthru
      _
    // Predicated region
    $region46: #{nug_forward.1} parent=1 // pred_check
      _
    $region47: #{nug_forward.1} parent=1 // pred_check_branch
      %52 = sbr.rel (0) target = $region49
    $region48: #{nug_forward.1} parent=1 // pred_region
      _
    $region49: #{nug_forward.1} parent=1 // pred_fallthru
      _
    // Predicated region
    $region50: #{nug_forward.1} parent=1 // pred_check
      _
    $region51: #{nug_forward.1} parent=1 // pred_check_branch
      %54 = sbr.rel (0) target = $region53
    $region52: #{nug_forward.1} parent=1 // pred_region
      _
    $region53: #{nug_forward.1} parent=1 // pred_fallthru
      _
    // Predicated region
    $region54: #{nug_forward.1} parent=1 // pred_check
      _
    $region55: #{nug_forward.1} parent=1 // pred_check_branch
      %56 = sbr.rel (0) target = $region57
    $region56: #{nug_forward.1} parent=1 // pred_region
      _
    $region57: #{nug_forward.1} parent=1 // pred_fallthru
      _
    // Predicated region
    $region58: #{nug_forward.1} parent=1 // pred_check
      _
    $region59: #{nug_forward.1} parent=1 // pred_check_branch
      %58 = sbr.rel (0) target = $region61
    $region60: #{nug_forward.1} parent=1 // pred_region
      _
    $region61: #{nug_forward.1} parent=1 // pred_fallthru
      _
    // Predicated region
    $region62: #{nug_forward.1} parent=1 // pred_check
      _
    $region63: #{nug_forward.1} parent=1 // pred_check_branch
      %60 = sbr.rel (0) target = $region65
    $region64: #{nug_forward.1} parent=1 // pred_region
      _
    $region65: #{nug_forward.1} parent=1 // pred_fallthru
      _
    // Predicated region
    $region66: #{nug_forward.1} parent=1 // pred_check
      _
    $region67: #{nug_forward.1} parent=1 // pred_check_branch
      %62 = sbr.rel (0) target = $region69
    $region68: #{nug_forward.1} parent=1 // pred_region
      _
    $region69: #{nug_forward.1} parent=1 // pred_fallthru
      _
    // Predicated region
    $region70: #{nug_forward.1} parent=1 // pred_check
      _
    $region71: #{nug_forward.1} parent=1 // pred_check_branch
      %64 = sbr.rel (0) target = $region73
    $region72: #{nug_forward.1} parent=1 // pred_region
      _
    $region73: #{nug_forward.1} parent=1 // pred_fallthru
      _
    // Predicated region
    $region74: #{nug_forward.1} parent=1 // pred_check
      _
    $region75: #{nug_forward.1} parent=1 // pred_check_branch
      %66 = sbr.rel (0) target = $region77
    $region76: #{nug_forward.1} parent=1 // pred_region
      _
    $region77: #{nug_forward.1} parent=1 // pred_fallthru
      _
    // Predicated region
    $region78: #{nug_forward.1} parent=1 // pred_check
      _
    $region79: #{nug_forward.1} parent=1 // pred_check_branch
      %68 = sbr.rel (0) target = $region81
    $region80: #{nug_forward.1} parent=1 // pred_region
      _
    $region81: #{nug_forward.1} parent=1 // pred_fallthru
      _
    // Predicated region
    $region82: #{nug_forward.1} parent=1 // pred_check
      _
    $region83: #{nug_forward.1} parent=1 // pred_check_branch
      %70 = sbr.rel (0) target = $region85
    $region84: #{nug_forward.1} parent=1 // pred_region
      _
    $region85: #{nug_forward.1} parent=1 // pred_fallthru
      _
    %v72 = vld [vmem:[%s0] sm:$0xff]
    %v73 = vld [vmem:[%s0 + $0x8] sm:$0xff]
    %v74 = vlaneseq
    %v75 = vand.u32 %v74, 127
    %76 = vset.pattern.permute.xlu0 0
    %77 = vperm.xlu0 %76, %v72
    %v78 = vpop.permute.xlu0 %77
    %79 = vset.pattern.permute.xlu0 0
    %80 = vperm.xlu0 %79, %v73
    %v81 = vpop.permute.xlu0 %80
    %vm82 = vcmp.eq.s32.totalorder %v75, %v78
    %vm83 = vcmp.eq.s32.totalorder %v75, %v81
    %v84 = vsel %vm82, 1, 0
    %v85 = vsel %vm83, 1, 0
    %v86 = vcvt.s32.f32 %v84
    %v87 = vcvt.s32.f32 %v85
    %v88 = vld [vmem:[%s3] sm:$0xff]
    %v89 = vld [vmem:[%s3 + $0x8] sm:$0xff]
    %v90 = vld [vmem:[%s3 + $0x10] sm:$0xff]
    %v91 = vld [vmem:[%s3 + $0x18] sm:$0xff]
    %v92 = vld [vmem:[%s3 + $0x20] sm:$0xff]
    %v93 = vld [vmem:[%s3 + $0x28] sm:$0xff]
    %v94 = vld [vmem:[%s3 + $0x30] sm:$0xff]
    %v95 = vld [vmem:[%s3 + $0x38] sm:$0xff]
    %v96 = vld [vmem:[%s3 + $0x40] sm:$0xff]
    %v97 = vld [vmem:[%s3 + $0x48] sm:$0xff]
    %v98 = vld [vmem:[%s3 + $0x50] sm:$0xff]
    %v99 = vld [vmem:[%s3 + $0x58] sm:$0xff]
    %v100 = vld [vmem:[%s3 + $0x60] sm:$0xff]
    %v101 = vld [vmem:[%s3 + $0x68] sm:$0xff]
    %v102 = vld [vmem:[%s3 + $0x70] sm:$0xff]
    %v103 = vld [vmem:[%s3 + $0x78] sm:$0xff]
    %v104 = vld [vmem:[%s4] sm:$0xff]
    %105 = vmatpush.msra.mxu0 %v103
    %106 = vmatpush.msra.mxu0 %v102
    %107 = vmatpush.msra.mxu0 %v101
    %108 = vmatpush.msra.mxu0 %v100
    %109 = vmatpush.msra.mxu0 %v99
    %110 = vmatpush.msra.mxu0 %v98
    %111 = vmatpush.msra.mxu0 %v97
    %112 = vmatpush.msra.mxu0 %v96
    %113 = vmatpush.msra.mxu0 %v95
    %114 = vmatpush.msra.mxu0 %v94
    %115 = vmatpush.msra.mxu0 %v93
    %116 = vmatpush.msra.mxu0 %v92
    %117 = vmatpush.msra.mxu0 %v91
    %118 = vmatpush.msra.mxu0 %v90
    %119 = vmatpush.msra.mxu0 %v89
    %120 = vmatpush.msra.mxu0 %v88
    %121 = vmatmul.f32.gmra.mxu0 %v86
    %v122 = vpop.f32.mrf.mxu0
    %v123 = vadd.f32 %v104, %v122
    %124 = vmatmul.f32.gmra.mxu0 %v87
    %v125 = vpop.f32.mrf.mxu0
    %v126 = vadd.f32 %v104, %v125
    %127 = vdwg.mxu0
    %v128 = vld [vmem:[%s5] sm:$0x1]
    %v129 = vld [vmem:[%s6] sm:$0x1]
    %vm130 = vcmask 261120
    %v131 = vsel %vm130, %v123, 0.0
    %132 = vadd.xlane.f32.xlu0 %v131
    %v133 = vpop.xlane.xlu0 %132
    %v134 = vsel %vm130, %v126, 0.0
    %135 = vadd.xlane.f32.xlu0 %v134
    %v136 = vpop.xlane.xlu0 %135
    %v137 = vrcp.pop 32.0
    %v138 = vmul.f32 32.0, %v137
    %v139 = vsub.f32 1.0, %v138
    %v140 = vmul.f32 %v137, %v139
    %v141 = vadd.f32 %v137, %v140
    %vm142 = vweird.f32 %v137
    %v143 = vsel %vm142, %v137, %v141
    %v144 = vmul.f32 %v133, %v143
    %v145 = vmul.f32 %v136, %v143
    %v146 = vsub.f32 %v123, %v144
    %v147 = vsub.f32 %v126, %v145
    %v148 = vmul.f32 %v146, %v146
    %v149 = vmul.f32 %v147, %v147
    %v150 = vsel %vm130, %v148, 0.0
    %151 = vadd.xlane.f32.xlu0 %v150
    %v152 = vpop.xlane.xlu0 %151
    %v153 = vsel %vm130, %v149, 0.0
    %154 = vadd.xlane.f32.xlu0 %v153
    %v155 = vpop.xlane.xlu0 %154
    %v156 = vmul.f32 %v152, %v143
    %v157 = vmul.f32 %v155, %v143
    %v158 = vadd.f32 %v156, 1e-12
    %v159 = vadd.f32 %v157, 1e-12
    %v160 = vrsqrt.pop %v158
    %v161 = vmul.f32 %v160, %v158
    %v162 = vmul.f32 %v161, %v160
    %v163 = vmul.f32 0.5, %v162
    %v164 = vsub.f32 1.5, %v163
    %v165 = vmul.f32 %v160, %v164
    %vm166 = vweird.f32 %v158
    %vm167 = vweird.f32 %v160
    %vm168 = vmor %vm166, %vm167
    %v169 = vsel %vm168, %v160, %v165
    %v170 = vrsqrt.pop %v159
    %v171 = vmul.f32 %v170, %v159
    %v172 = vmul.f32 %v171, %v170
    %v173 = vmul.f32 0.5, %v172
    %v174 = vsub.f32 1.5, %v173
    %v175 = vmul.f32 %v170, %v174
    %vm176 = vweird.f32 %v159
    %vm177 = vweird.f32 %v170
    %vm178 = vmor %vm176, %vm177
    %v179 = vsel %vm178, %v170, %v175
    %v180 = vmul.f32 %v146, %v169
    %v181 = vmul.f32 %v147, %v179
    %v183 = vperm.slane %v128, 0
    %v185 = vmul.f32 %v180, %v183
    %v186 = vmul.f32 %v181, %v183
    %v188 = vperm.slane %v129, 0
    %v190 = vadd.f32 %v185, %v188
    %v191 = vadd.f32 %v186, %v188
    %v192 = vld [vmem:[%s1] sm:$0x1]
    %v193 = vld [vmem:[%s1 + $0x1] sm:$0x1]
    %v194 = vld [vmem:[%s7] sm:$0xf]
    %v195 = vld [vmem:[%s7 + $0x4] sm:$0xf]
    %v196 = vld [vmem:[%s7 + $0x8] sm:$0xf]
    %v197 = vld [vmem:[%s7 + $0xc] sm:$0xf]
    %v198 = vld [vmem:[%s8] sm:$0x1]
    %v199 = vpack.c.bf16 %v191, %v190
    %v201 = vperm.slane %v198, 0
    %v207 = vunpack.c.l.b16 %v194
    %v208 = vunpack.c.l.b16 %v195
    %v209 = vunpack.c.l.b16 %v196
    %v210 = vunpack.c.l.b16 %v197
    %v211 = vpack.c.b16 %v208, %v207
    %v212 = vpack.c.b16 %v210, %v209
    %v216 = vsel %vm130, %v199, 0
    %218 = vmatpush.bf16.msra.mxu0 0
    %219 = vmatpush.bf16.msra.mxu0 0
    %220 = vmatpush.bf16.msra.mxu0 0
    %221 = vmatpush.bf16.msra.mxu0 0
    %222 = vmatpush.bf16.msra.mxu0 0
    %223 = vmatpush.bf16.msra.mxu0 0
    %224 = vmatpush.bf16.msra.mxu0 %v212
    %225 = vmatpush.bf16.msra.mxu0 %v211
    %226 = vmatmul.bf16.gmra.mxu0 %v216
    %v227 = vpop.f32.mrf.mxu0
    %v228 = vadd.f32 %v201, %v227
    %v229 = vpop.f32.mrf.mxu0
    %v230 = vadd.f32 %v201, %v229
    %231 = vdwg.mxu0
    %v232 = vpack.c.bf16 %v228, %v228
    %v233 = vpack.c.bf16 %v230, %v230
    %v235 = vunpack.c.l.b16 %v232
    %v236 = vpack.c.b16 %v235, %v235
    %237 = vrot.lane.b32.xlu0 %v236, 96
    %v238 = vpop.permute.xlu0 %237
    %vm239 = vcmask 130048
    %v241 = vsel %vm239, %v232, 0
    %v244 = vsel %vm239, %v238, 0
    %246 = vmatpush.bf16.xpose.msra.mxu0 0
    %247 = vmatpush.bf16.xpose.msra.mxu0 0
    %248 = vmatpush.bf16.xpose.msra.mxu0 0
    %249 = vmatpush.bf16.xpose.msra.mxu0 0
    %250 = vmatpush.bf16.xpose.msra.mxu0 0
    %251 = vmatpush.bf16.xpose.msra.mxu0 0
    %252 = vmatpush.bf16.xpose.msra.mxu0 0
    %253 = vmatpush.bf16.xpose.msra.mxu0 %v244
    %254 = vmatmul.bf16.gmra.mxu0 %v241
    %v255 = vpop.f32.mrf.mxu0
    %v256 = vadd.f32 0.0, %v255
    %v257 = vpop.f32.mrf.mxu0
    %258 = vdwg.mxu0
    %v260 = vunpack.c.l.b16 %v233
    %v261 = vpack.c.b16 %v260, %v260
    %262 = vrot.lane.b32.xlu0 %v261, 96
    %v263 = vpop.permute.xlu0 %262
    %v265 = vsel %vm239, %v233, 0
    %v268 = vsel %vm239, %v263, 0
    %270 = vmatpush.bf16.xpose.msra.mxu0 0
    %271 = vmatpush.bf16.xpose.msra.mxu0 0
    %272 = vmatpush.bf16.xpose.msra.mxu0 0
    %273 = vmatpush.bf16.xpose.msra.mxu0 0
    %274 = vmatpush.bf16.xpose.msra.mxu0 0
    %275 = vmatpush.bf16.xpose.msra.mxu0 0
    %276 = vmatpush.bf16.xpose.msra.mxu0 0
    %277 = vmatpush.bf16.xpose.msra.mxu0 %v268
    %278 = vmatmul.bf16.gmra.mxu0 %v265
    %v279 = vpop.f32.mrf.mxu0
    %v280 = vadd.f32 0.0, %v279
    %v281 = vpop.f32.mrf.mxu0
    %282 = vdwg.mxu0
    %v283 = vmul.f32 %v256, 0.25
    %v284 = vmul.f32 %v280, 0.25
    %v287 = vperm.slane %v192, 0
    %v288 = vperm.slane %v193, 0
    %v291 = vadd.f32 %v283, %v287
    %v292 = vadd.f32 %v284, %v288
    %vm293 = vcmask 64512
    %v294 = vsel %vm293, %v291, -inf
    %295 = vmax.xlane.f32.xlu0 %v294
    %v296 = vpop.xlane.xlu0 %295
    %v297 = vsel %vm293, %v292, -inf
    %298 = vmax.xlane.f32.xlu0 %v297
    %v299 = vpop.xlane.xlu0 %298
    %v300 = vsub.f32 %v291, %v296
    %v301 = vsub.f32 %v292, %v299
    %v302 = vmul.f32 %v300, 1.442695
    %v303 = vpow.pop %v302
    %v304 = vmul.f32 %v301, 1.442695
    %v305 = vpow.pop %v304
    %v306 = vsel %vm293, %v303, 0.0
    %307 = vadd.xlane.f32.xlu0 %v306
    %v308 = vpop.xlane.xlu0 %307
    %v309 = vsel %vm293, %v305, 0.0
    %310 = vadd.xlane.f32.xlu0 %v309
    %v311 = vpop.xlane.xlu0 %310
    %v312 = vrcp.pop %v308
    %v313 = vmul.f32 %v308, %v312
    %v314 = vsub.f32 1.0, %v313
    %v315 = vmul.f32 %v312, %v314
    %v316 = vadd.f32 %v312, %v315
    %vm317 = vweird.f32 %v308
    %vm318 = vweird.f32 %v312
    %vm319 = vmor %vm317, %vm318
    %v320 = vsel %vm319, %v312, %v316
    %v321 = vand.u32 2147483647, %v308
    %vm322 = vcmp.eq.f32.partialorder %v321, 8.507059e+37
    %v323 = vand.u32 %v308, 2147483648
    %v324 = vor.u32 1.1754944e-38, %v323
    %v325 = vsel %vm322, %v324, %v320
    %v326 = vrcp.pop %v311
    %v327 = vmul.f32 %v311, %v326
    %v328 = vsub.f32 1.0, %v327
    %v329 = vmul.f32 %v326, %v328
    %v330 = vadd.f32 %v326, %v329
    %vm331 = vweird.f32 %v311
    %vm332 = vweird.f32 %v326
    %vm333 = vmor %vm331, %vm332
    %v334 = vsel %vm333, %v326, %v330
    %v335 = vand.u32 2147483647, %v311
    %vm336 = vcmp.eq.f32.partialorder %v335, 8.507059e+37
    %v337 = vand.u32 %v311, 2147483648
    %v338 = vor.u32 1.1754944e-38, %v337
    %v339 = vsel %vm336, %v338, %v334
    %v340 = vmul.f32 %v303, %v325
    %v341 = vmul.f32 %v305, %v339
    %v342 = vpack.c.bf16 %v340, %v340
    %v343 = vpack.c.bf16 %v341, %v341
    %344 = vrot.lane.b32.xlu0 %v236, 64
    %v345 = vpop.permute.xlu0 %344
    %v347 = vsel %vm293, %v342, 0
    %vm349 = vcmask 1043456
    %v351 = vsel %vm349, %v345, 0
    %353 = vmatpush.bf16.msra.mxu0 0
    %354 = vmatpush.bf16.msra.mxu0 0
    %355 = vmatpush.bf16.msra.mxu0 0
    %356 = vmatpush.bf16.msra.mxu0 0
    %357 = vmatpush.bf16.msra.mxu0 0
    %358 = vmatpush.bf16.msra.mxu0 0
    %359 = vmatpush.bf16.msra.mxu0 0
    %360 = vmatpush.bf16.msra.mxu0 %v351
    %361 = vmatmul.bf16.gmra.mxu0 %v347
    %v362 = vpop.f32.mrf.mxu0
    %v363 = vadd.f32 0.0, %v362
    %v364 = vpop.f32.mrf.mxu0
    %365 = vdwg.mxu0
    %366 = vrot.lane.b32.xlu0 %v261, 64
    %v367 = vpop.permute.xlu0 %366
    %v369 = vsel %vm293, %v343, 0
    %v372 = vsel %vm349, %v367, 0
    %374 = vmatpush.bf16.msra.mxu0 0
    %375 = vmatpush.bf16.msra.mxu0 0
    %376 = vmatpush.bf16.msra.mxu0 0
    %377 = vmatpush.bf16.msra.mxu0 0
    %378 = vmatpush.bf16.msra.mxu0 0
    %379 = vmatpush.bf16.msra.mxu0 0
    %380 = vmatpush.bf16.msra.mxu0 0
    %381 = vmatpush.bf16.msra.mxu0 %v372
    %382 = vmatmul.bf16.gmra.mxu0 %v369
    %v383 = vpop.f32.mrf.mxu0
    %v384 = vadd.f32 0.0, %v383
    %v385 = vpop.f32.mrf.mxu0
    %386 = vdwg.mxu0
    %387 = vrot.lane.b32.xlu0 %v236, 112
    %v388 = vpop.permute.xlu0 %387
    %389 = vrot.lane.b32.xlu0 %v236, 80
    %v390 = vpop.permute.xlu0 %389
    %v392 = vsel %vm239, %v388, 0
    %v395 = vsel %vm239, %v390, 0
    %397 = vmatpush.bf16.xpose.msra.mxu0 0
    %398 = vmatpush.bf16.xpose.msra.mxu0 0
    %399 = vmatpush.bf16.xpose.msra.mxu0 0
    %400 = vmatpush.bf16.xpose.msra.mxu0 0
    %401 = vmatpush.bf16.xpose.msra.mxu0 0
    %402 = vmatpush.bf16.xpose.msra.mxu0 0
    %403 = vmatpush.bf16.xpose.msra.mxu0 0
    %404 = vmatpush.bf16.xpose.msra.mxu0 %v395
    %405 = vmatmul.bf16.gmra.mxu0 %v392
    %v406 = vpop.f32.mrf.mxu0
    %v407 = vadd.f32 0.0, %v406
    %v408 = vpop.f32.mrf.mxu0
    %409 = vdwg.mxu0
    %410 = vrot.lane.b32.xlu0 %v261, 112
    %v411 = vpop.permute.xlu0 %410
    %412 = vrot.lane.b32.xlu0 %v261, 80
    %v413 = vpop.permute.xlu0 %412
    %v415 = vsel %vm239, %v411, 0
    %v418 = vsel %vm239, %v413, 0
    %420 = vmatpush.bf16.xpose.msra.mxu0 0
    %421 = vmatpush.bf16.xpose.msra.mxu0 0
    %422 = vmatpush.bf16.xpose.msra.mxu0 0
    %423 = vmatpush.bf16.xpose.msra.mxu0 0
    %424 = vmatpush.bf16.xpose.msra.mxu0 0
    %425 = vmatpush.bf16.xpose.msra.mxu0 0
    %426 = vmatpush.bf16.xpose.msra.mxu0 0
    %427 = vmatpush.bf16.xpose.msra.mxu0 %v418
    %428 = vmatmul.bf16.gmra.mxu0 %v415
    %v429 = vpop.f32.mrf.mxu0
    %v430 = vadd.f32 0.0, %v429
    %v431 = vpop.f32.mrf.mxu0
    %432 = vdwg.mxu0
    %v433 = vmul.f32 %v407, 0.25
    %v434 = vmul.f32 %v430, 0.25
    %v435 = vadd.f32 %v433, %v287
    %v436 = vadd.f32 %v434, %v288
    %v437 = vsel %vm293, %v435, -inf
    %438 = vmax.xlane.f32.xlu0 %v437
    %v439 = vpop.xlane.xlu0 %438
    %v440 = vsel %vm293, %v436, -inf
    %441 = vmax.xlane.f32.xlu0 %v440
    %v442 = vpop.xlane.xlu0 %441
    %v443 = vsub.f32 %v435, %v439
    %v444 = vsub.f32 %v436, %v442
    %v445 = vmul.f32 %v443, 1.442695
    %v446 = vpow.pop %v445
    %v447 = vmul.f32 %v444, 1.442695
    %v448 = vpow.pop %v447
    %v449 = vsel %vm293, %v446, 0.0
    %450 = vadd.xlane.f32.xlu0 %v449
    %v451 = vpop.xlane.xlu0 %450
    %v452 = vsel %vm293, %v448, 0.0
    %453 = vadd.xlane.f32.xlu0 %v452
    %v454 = vpop.xlane.xlu0 %453
    %v455 = vrcp.pop %v451
    %v456 = vmul.f32 %v451, %v455
    %v457 = vsub.f32 1.0, %v456
    %v458 = vmul.f32 %v455, %v457
    %v459 = vadd.f32 %v455, %v458
    %vm460 = vweird.f32 %v451
    %vm461 = vweird.f32 %v455
    %vm462 = vmor %vm460, %vm461
    %v463 = vsel %vm462, %v455, %v459
    %v464 = vand.u32 2147483647, %v451
    %vm465 = vcmp.eq.f32.partialorder %v464, 8.507059e+37
    %v466 = vand.u32 %v451, 2147483648
    %v467 = vor.u32 1.1754944e-38, %v466
    %v468 = vsel %vm465, %v467, %v463
    %v469 = vrcp.pop %v454
    %v470 = vmul.f32 %v454, %v469
    %v471 = vsub.f32 1.0, %v470
    %v472 = vmul.f32 %v469, %v471
    %v473 = vadd.f32 %v469, %v472
    %vm474 = vweird.f32 %v454
    %vm475 = vweird.f32 %v469
    %vm476 = vmor %vm474, %vm475
    %v477 = vsel %vm476, %v469, %v473
    %v478 = vand.u32 2147483647, %v454
    %vm479 = vcmp.eq.f32.partialorder %v478, 8.507059e+37
    %v480 = vand.u32 %v454, 2147483648
    %v481 = vor.u32 1.1754944e-38, %v480
    %v482 = vsel %vm479, %v481, %v477
    %v483 = vmul.f32 %v446, %v468
    %v484 = vmul.f32 %v448, %v482
    %v485 = vpack.c.bf16 %v483, %v483
    %v486 = vpack.c.bf16 %v484, %v484
    %487 = vrot.lane.b32.xlu0 %v236, 48
    %v488 = vpop.permute.xlu0 %487
    %v490 = vsel %vm293, %v485, 0
    %v493 = vsel %vm349, %v488, 0
    %495 = vmatpush.bf16.msra.mxu0 0
    %496 = vmatpush.bf16.msra.mxu0 0
    %497 = vmatpush.bf16.msra.mxu0 0
    %498 = vmatpush.bf16.msra.mxu0 0
    %499 = vmatpush.bf16.msra.mxu0 0
    %500 = vmatpush.bf16.msra.mxu0 0
    %501 = vmatpush.bf16.msra.mxu0 0
    %502 = vmatpush.bf16.msra.mxu0 %v493
    %503 = vmatmul.bf16.gmra.mxu0 %v490
    %v504 = vpop.f32.mrf.mxu0
    %v505 = vadd.f32 0.0, %v504
    %v506 = vpop.f32.mrf.mxu0
    %507 = vdwg.mxu0
    %508 = vrot.lane.b32.xlu0 %v261, 48
    %v509 = vpop.permute.xlu0 %508
    %v511 = vsel %vm293, %v486, 0
    %v514 = vsel %vm349, %v509, 0
    %516 = vmatpush.bf16.msra.mxu0 0
    %517 = vmatpush.bf16.msra.mxu0 0
    %518 = vmatpush.bf16.msra.mxu0 0
    %519 = vmatpush.bf16.msra.mxu0 0
    %520 = vmatpush.bf16.msra.mxu0 0
    %521 = vmatpush.bf16.msra.mxu0 0
    %522 = vmatpush.bf16.msra.mxu0 0
    %523 = vmatpush.bf16.msra.mxu0 %v514
    %524 = vmatmul.bf16.gmra.mxu0 %v511
    %v525 = vpop.f32.mrf.mxu0
    %v526 = vadd.f32 0.0, %v525
    %v527 = vpop.f32.mrf.mxu0
    %528 = vdwg.mxu0
    %531 = vrot.lane.b32.xlu0 %v505, 16
    %v532 = vpop.permute.xlu0 %531
    %533 = vrot.lane.b32.xlu0 %v526, 16
    %v534 = vpop.permute.xlu0 %533
    %v537 = vsel %vm239, %v363, %v532
    %v538 = vsel %vm239, %v384, %v534
    %v539 = vld [vmem:[%s9] sm:$0xf]
    %v540 = vld [vmem:[%s9 + $0x4] sm:$0xf]
    %v541 = vld [vmem:[%s9 + $0x8] sm:$0xf]
    %v542 = vld [vmem:[%s9 + $0xc] sm:$0xf]
    %v543 = vld [vmem:[%s10] sm:$0x1]
    %v544 = vpack.c.bf16 %v538, %v537
    %v546 = vperm.slane %v543, 0
    %v552 = vunpack.c.l.b16 %v539
    %v553 = vunpack.c.l.b16 %v540
    %v554 = vunpack.c.l.b16 %v541
    %v555 = vunpack.c.l.b16 %v542
    %v556 = vpack.c.b16 %v553, %v552
    %v557 = vpack.c.b16 %v555, %v554
    %v561 = vsel %vm130, %v544, 0
    %563 = vmatpush.bf16.msra.mxu0 0
    %564 = vmatpush.bf16.msra.mxu0 0
    %565 = vmatpush.bf16.msra.mxu0 0
    %566 = vmatpush.bf16.msra.mxu0 0
    %567 = vmatpush.bf16.msra.mxu0 0
    %568 = vmatpush.bf16.msra.mxu0 0
    %569 = vmatpush.bf16.msra.mxu0 %v557
    %570 = vmatpush.bf16.msra.mxu0 %v556
    %571 = vmatmul.bf16.gmra.mxu0 %v561
    %v572 = vpop.f32.mrf.mxu0
    %v573 = vadd.f32 %v546, %v572
    %v574 = vpop.f32.mrf.mxu0
    %v575 = vadd.f32 %v546, %v574
    %576 = vdwg.mxu0
    %v577 = vadd.f32 %v190, %v573
    %v578 = vadd.f32 %v191, %v575
    %v579 = vld [vmem:[%s11] sm:$0x1]
    %v580 = vld [vmem:[%s12] sm:$0x1]
    %v581 = vsel %vm130, %v577, 0.0
    %582 = vadd.xlane.f32.xlu0 %v581
    %v583 = vpop.xlane.xlu0 %582
    %v584 = vsel %vm130, %v578, 0.0
    %585 = vadd.xlane.f32.xlu0 %v584
    %v586 = vpop.xlane.xlu0 %585
    %v587 = vmul.f32 %v583, %v143
    %v588 = vmul.f32 %v586, %v143
    %v589 = vsub.f32 %v577, %v587
    %v590 = vsub.f32 %v578, %v588
    %v591 = vmul.f32 %v589, %v589
    %v592 = vmul.f32 %v590, %v590
    %v593 = vsel %vm130, %v591, 0.0
    %594 = vadd.xlane.f32.xlu0 %v593
    %v595 = vpop.xlane.xlu0 %594
    %v596 = vsel %vm130, %v592, 0.0
    %597 = vadd.xlane.f32.xlu0 %v596
    %v598 = vpop.xlane.xlu0 %597
    %v599 = vmul.f32 %v595, %v143
    %v600 = vmul.f32 %v598, %v143
    %v601 = vadd.f32 %v599, 1e-12
    %v602 = vadd.f32 %v600, 1e-12
    %v603 = vrsqrt.pop %v601
    %v604 = vmul.f32 %v603, %v601
    %v605 = vmul.f32 %v604, %v603
    %v606 = vmul.f32 0.5, %v605
    %v607 = vsub.f32 1.5, %v606
    %v608 = vmul.f32 %v603, %v607
    %vm609 = vweird.f32 %v601
    %vm610 = vweird.f32 %v603
    %vm611 = vmor %vm609, %vm610
    %v612 = vsel %vm611, %v603, %v608
    %v613 = vrsqrt.pop %v602
    %v614 = vmul.f32 %v613, %v602
    %v615 = vmul.f32 %v614, %v613
    %v616 = vmul.f32 0.5, %v615
    %v617 = vsub.f32 1.5, %v616
    %v618 = vmul.f32 %v613, %v617
    %vm619 = vweird.f32 %v602
    %vm620 = vweird.f32 %v613
    %vm621 = vmor %vm619, %vm620
    %v622 = vsel %vm621, %v613, %v618
    %v623 = vmul.f32 %v589, %v612
    %v624 = vmul.f32 %v590, %v622
    %v626 = vperm.slane %v579, 0
    %v628 = vmul.f32 %v623, %v626
    %v629 = vmul.f32 %v624, %v626
    %v631 = vperm.slane %v580, 0
    %v633 = vadd.f32 %v628, %v631
    %v634 = vadd.f32 %v629, %v631
    %v635 = vld [vmem:[%s13] sm:$0xf]
    %v636 = vld [vmem:[%s13 + $0x4] sm:$0xf]
    %v637 = vld [vmem:[%s13 + $0x8] sm:$0xf]
    %v638 = vld [vmem:[%s13 + $0xc] sm:$0xf]
    %v639 = vld [vmem:[%s14] sm:$0x1]
    %v640 = vpack.c.bf16 %v634, %v633
    %v642 = vperm.slane %v639, 0
    %v648 = vunpack.c.l.b16 %v635
    %v649 = vunpack.c.l.b16 %v636
    %v650 = vunpack.c.l.b16 %v637
    %v651 = vunpack.c.l.b16 %v638
    %v652 = vpack.c.b16 %v649, %v648
    %v653 = vpack.c.b16 %v651, %v650
    %v657 = vsel %vm130, %v640, 0
    %659 = vmatpush.bf16.msra.mxu0 0
    %660 = vmatpush.bf16.msra.mxu0 0
    %661 = vmatpush.bf16.msra.mxu0 0
    %662 = vmatpush.bf16.msra.mxu0 0
    %663 = vmatpush.bf16.msra.mxu0 0
    %664 = vmatpush.bf16.msra.mxu0 0
    %665 = vmatpush.bf16.msra.mxu0 %v653
    %666 = vmatpush.bf16.msra.mxu0 %v652
    %667 = vmatmul.bf16.gmra.mxu0 %v657
    %v668 = vpop.f32.mrf.mxu0
    %v669 = vadd.f32 %v642, %v668
    %v670 = vpop.f32.mrf.mxu0
    %v671 = vadd.f32 %v642, %v670
    %672 = vdwg.mxu0
    %v673 = vmul.f32 %v669, 0.5
    %v674 = vmul.f32 %v671, 0.5
    %v675 = vmul.f32 %v669, 0.044715
    %v676 = vmul.f32 %v671, 0.044715
    %v677 = vmul.f32 %v675, %v669
    %v678 = vmul.f32 %v676, %v671
    %v679 = vmul.f32 %v677, %v669
    %v680 = vmul.f32 %v678, %v671
    %v681 = vadd.f32 %v669, %v679
    %v682 = vadd.f32 %v671, %v680
    %v683 = vmul.f32 %v681, 0.7978846
    %v684 = vmul.f32 %v682, 0.7978846
    %v685 = vtanh.pop %v683
    %v686 = vtanh.pop %v684
    %v687 = vadd.f32 %v685, 1.0
    %v688 = vadd.f32 %v686, 1.0
    %v689 = vmul.f32 %v673, %v687
    %v690 = vmul.f32 %v674, %v688
    %v691 = vld [vmem:[%s15] sm:$0xf]
    %v692 = vld [vmem:[%s15 + $0x4] sm:$0xf]
    %v693 = vld [vmem:[%s15 + $0x8] sm:$0xf]
    %v694 = vld [vmem:[%s15 + $0xc] sm:$0xf]
    %v695 = vld [vmem:[%s15 + $0x10] sm:$0xf]
    %v696 = vld [vmem:[%s15 + $0x14] sm:$0xf]
    %v697 = vld [vmem:[%s15 + $0x18] sm:$0xf]
    %v698 = vld [vmem:[%s15 + $0x1c] sm:$0xf]
    %v699 = vld [vmem:[%s16] sm:$0x1]
    %v700 = vpack.c.bf16 %v690, %v689
    %v702 = vperm.slane %v699, 0
    %v712 = vunpack.c.l.b16 %v691
    %v713 = vunpack.c.l.b16 %v692
    %v714 = vunpack.c.l.b16 %v693
    %v715 = vunpack.c.l.b16 %v694
    %v716 = vunpack.c.l.b16 %v695
    %v717 = vunpack.c.l.b16 %v696
    %v718 = vunpack.c.l.b16 %v697
    %v719 = vunpack.c.l.b16 %v698
    %v720 = vpack.c.b16 %v713, %v712
    %v721 = vpack.c.b16 %v715, %v714
    %v722 = vpack.c.b16 %v717, %v716
    %v723 = vpack.c.b16 %v719, %v718
    %vm728 = vcmask 523264
    %v730 = vsel %vm728, %v700, 0
    %732 = vmatpush.bf16.msra.mxu0 0
    %733 = vmatpush.bf16.msra.mxu0 0
    %734 = vmatpush.bf16.msra.mxu0 0
    %735 = vmatpush.bf16.msra.mxu0 0
    %736 = vmatpush.bf16.msra.mxu0 %v723
    %737 = vmatpush.bf16.msra.mxu0 %v722
    %738 = vmatpush.bf16.msra.mxu0 %v721
    %739 = vmatpush.bf16.msra.mxu0 %v720
    %740 = vmatmul.bf16.gmra.mxu0 %v730
    %v741 = vpop.f32.mrf.mxu0
    %v742 = vadd.f32 %v702, %v741
    %v743 = vpop.f32.mrf.mxu0
    %v744 = vadd.f32 %v702, %v743
    %745 = vdwg.mxu0
    %v746 = vadd.f32 %v633, %v742
    %v747 = vadd.f32 %v634, %v744
    %v748 = vld [vmem:[%s17] sm:$0x1]
    %v749 = vld [vmem:[%s18] sm:$0x1]
    %v750 = vsel %vm130, %v746, 0.0
    %751 = vadd.xlane.f32.xlu0 %v750
    %v752 = vpop.xlane.xlu0 %751
    %v753 = vsel %vm130, %v747, 0.0
    %754 = vadd.xlane.f32.xlu0 %v753
    %v755 = vpop.xlane.xlu0 %754
    %v756 = vmul.f32 %v752, %v143
    %v757 = vmul.f32 %v755, %v143
    %v758 = vsub.f32 %v746, %v756
    %v759 = vsub.f32 %v747, %v757
    %v760 = vmul.f32 %v758, %v758
    %v761 = vmul.f32 %v759, %v759
    %v762 = vsel %vm130, %v760, 0.0
    %763 = vadd.xlane.f32.xlu0 %v762
    %v764 = vpop.xlane.xlu0 %763
    %v765 = vsel %vm130, %v761, 0.0
    %766 = vadd.xlane.f32.xlu0 %v765
    %v767 = vpop.xlane.xlu0 %766
    %v768 = vmul.f32 %v764, %v143
    %v769 = vmul.f32 %v767, %v143
    %v770 = vadd.f32 %v768, 1e-12
    %v771 = vadd.f32 %v769, 1e-12
    %v772 = vrsqrt.pop %v770
    %v773 = vmul.f32 %v772, %v770
    %v774 = vmul.f32 %v773, %v772
    %v775 = vmul.f32 0.5, %v774
    %v776 = vsub.f32 1.5, %v775
    %v777 = vmul.f32 %v772, %v776
    %vm778 = vweird.f32 %v770
    %vm779 = vweird.f32 %v772
    %vm780 = vmor %vm778, %vm779
    %v781 = vsel %vm780, %v772, %v777
    %v782 = vrsqrt.pop %v771
    %v783 = vmul.f32 %v782, %v771
    %v784 = vmul.f32 %v783, %v782
    %v785 = vmul.f32 0.5, %v784
    %v786 = vsub.f32 1.5, %v785
    %v787 = vmul.f32 %v782, %v786
    %vm788 = vweird.f32 %v771
    %vm789 = vweird.f32 %v782
    %vm790 = vmor %vm788, %vm789
    %v791 = vsel %vm790, %v782, %v787
    %v792 = vmul.f32 %v758, %v781
    %v793 = vmul.f32 %v759, %v791
    %v795 = vperm.slane %v748, 0
    %v797 = vmul.f32 %v792, %v795
    %v798 = vmul.f32 %v793, %v795
    %v800 = vperm.slane %v749, 0
    %v802 = vadd.f32 %v797, %v800
    %v803 = vadd.f32 %v798, %v800
    %s804 = scalar_lea.vmem %s7, 16
    %v805 = vld [vmem:[%s804] sm:$0xf]
    %v806 = vld [vmem:[%s804 + $0x4] sm:$0xf]
    %v807 = vld [vmem:[%s804 + $0x8] sm:$0xf]
    %v808 = vld [vmem:[%s804 + $0xc] sm:$0xf]
    %s809 = scalar_lea.vmem %s8, 1
    %v810 = vld [vmem:[%s809] sm:$0x1]
    %v811 = vpack.c.bf16 %v803, %v802
    %v813 = vperm.slane %v810, 0
    %v819 = vunpack.c.l.b16 %v805
    %v820 = vunpack.c.l.b16 %v806
    %v821 = vunpack.c.l.b16 %v807
    %v822 = vunpack.c.l.b16 %v808
    %v823 = vpack.c.b16 %v820, %v819
    %v824 = vpack.c.b16 %v822, %v821
    %v828 = vsel %vm130, %v811, 0
    %830 = vmatpush.bf16.msra.mxu0 0
    %831 = vmatpush.bf16.msra.mxu0 0
    %832 = vmatpush.bf16.msra.mxu0 0
    %833 = vmatpush.bf16.msra.mxu0 0
    %834 = vmatpush.bf16.msra.mxu0 0
    %835 = vmatpush.bf16.msra.mxu0 0
    %836 = vmatpush.bf16.msra.mxu0 %v824
    %837 = vmatpush.bf16.msra.mxu0 %v823
    %838 = vmatmul.bf16.gmra.mxu0 %v828
    %v839 = vpop.f32.mrf.mxu0
    %v840 = vadd.f32 %v813, %v839
    %v841 = vpop.f32.mrf.mxu0
    %v842 = vadd.f32 %v813, %v841
    %843 = vdwg.mxu0
    %v844 = vpack.c.bf16 %v840, %v840
    %v845 = vpack.c.bf16 %v842, %v842
    %v847 = vunpack.c.l.b16 %v844
    %v848 = vpack.c.b16 %v847, %v847
    %849 = vrot.lane.b32.xlu0 %v848, 96
    %v850 = vpop.permute.xlu0 %849
    %v852 = vsel %vm239, %v844, 0
    %v855 = vsel %vm239, %v850, 0
    %857 = vmatpush.bf16.xpose.msra.mxu0 0
    %858 = vmatpush.bf16.xpose.msra.mxu0 0
    %859 = vmatpush.bf16.xpose.msra.mxu0 0
    %860 = vmatpush.bf16.xpose.msra.mxu0 0
    %861 = vmatpush.bf16.xpose.msra.mxu0 0
    %862 = vmatpush.bf16.xpose.msra.mxu0 0
    %863 = vmatpush.bf16.xpose.msra.mxu0 0
    %864 = vmatpush.bf16.xpose.msra.mxu0 %v855
    %865 = vmatmul.bf16.gmra.mxu0 %v852
    %v866 = vpop.f32.mrf.mxu0
    %v867 = vadd.f32 0.0, %v866
    %v868 = vpop.f32.mrf.mxu0
    %869 = vdwg.mxu0
    %v871 = vunpack.c.l.b16 %v845
    %v872 = vpack.c.b16 %v871, %v871
    %873 = vrot.lane.b32.xlu0 %v872, 96
    %v874 = vpop.permute.xlu0 %873
    %v876 = vsel %vm239, %v845, 0
    %v879 = vsel %vm239, %v874, 0
    %881 = vmatpush.bf16.xpose.msra.mxu0 0
    %882 = vmatpush.bf16.xpose.msra.mxu0 0
    %883 = vmatpush.bf16.xpose.msra.mxu0 0
    %884 = vmatpush.bf16.xpose.msra.mxu0 0
    %885 = vmatpush.bf16.xpose.msra.mxu0 0
    %886 = vmatpush.bf16.xpose.msra.mxu0 0
    %887 = vmatpush.bf16.xpose.msra.mxu0 0
    %888 = vmatpush.bf16.xpose.msra.mxu0 %v879
    %889 = vmatmul.bf16.gmra.mxu0 %v876
    %v890 = vpop.f32.mrf.mxu0
    %v891 = vadd.f32 0.0, %v890
    %v892 = vpop.f32.mrf.mxu0
    %893 = vdwg.mxu0
    %v894 = vmul.f32 %v867, 0.25
    %v895 = vmul.f32 %v891, 0.25
    %v896 = vadd.f32 %v894, %v287
    %v897 = vadd.f32 %v895, %v288
    %v898 = vsel %vm293, %v896, -inf
    %899 = vmax.xlane.f32.xlu0 %v898
    %v900 = vpop.xlane.xlu0 %899
    %v901 = vsel %vm293, %v897, -inf
    %902 = vmax.xlane.f32.xlu0 %v901
    %v903 = vpop.xlane.xlu0 %902
    %v904 = vsub.f32 %v896, %v900
    %v905 = vsub.f32 %v897, %v903
    %v906 = vmul.f32 %v904, 1.442695
    %v907 = vpow.pop %v906
    %v908 = vmul.f32 %v905, 1.442695
    %v909 = vpow.pop %v908
    %v910 = vsel %vm293, %v907, 0.0
    %911 = vadd.xlane.f32.xlu0 %v910
    %v912 = vpop.xlane.xlu0 %911
    %v913 = vsel %vm293, %v909, 0.0
    %914 = vadd.xlane.f32.xlu0 %v913
    %v915 = vpop.xlane.xlu0 %914
    %v916 = vrcp.pop %v912
    %v917 = vmul.f32 %v912, %v916
    %v918 = vsub.f32 1.0, %v917
    %v919 = vmul.f32 %v916, %v918
    %v920 = vadd.f32 %v916, %v919
    %vm921 = vweird.f32 %v912
    %vm922 = vweird.f32 %v916
    %vm923 = vmor %vm921, %vm922
    %v924 = vsel %vm923, %v916, %v920
    %v925 = vand.u32 2147483647, %v912
    %vm926 = vcmp.eq.f32.partialorder %v925, 8.507059e+37
    %v927 = vand.u32 %v912, 2147483648
    %v928 = vor.u32 1.1754944e-38, %v927
    %v929 = vsel %vm926, %v928, %v924
    %v930 = vrcp.pop %v915
    %v931 = vmul.f32 %v915, %v930
    %v932 = vsub.f32 1.0, %v931
    %v933 = vmul.f32 %v930, %v932
    %v934 = vadd.f32 %v930, %v933
    %vm935 = vweird.f32 %v915
    %vm936 = vweird.f32 %v930
    %vm937 = vmor %vm935, %vm936
    %v938 = vsel %vm937, %v930, %v934
    %v939 = vand.u32 2147483647, %v915
    %vm940 = vcmp.eq.f32.partialorder %v939, 8.507059e+37
    %v941 = vand.u32 %v915, 2147483648
    %v942 = vor.u32 1.1754944e-38, %v941
    %v943 = vsel %vm940, %v942, %v938
    %v944 = vmul.f32 %v907, %v929
    %v945 = vmul.f32 %v909, %v943
    %v946 = vpack.c.bf16 %v944, %v944
    %v947 = vpack.c.bf16 %v945, %v945
    %948 = vrot.lane.b32.xlu0 %v848, 64
    %v949 = vpop.permute.xlu0 %948
    %v951 = vsel %vm293, %v946, 0
    %v954 = vsel %vm349, %v949, 0
    %956 = vmatpush.bf16.msra.mxu0 0
    %957 = vmatpush.bf16.msra.mxu0 0
    %958 = vmatpush.bf16.msra.mxu0 0
    %959 = vmatpush.bf16.msra.mxu0 0
    %960 = vmatpush.bf16.msra.mxu0 0
    %961 = vmatpush.bf16.msra.mxu0 0
    %962 = vmatpush.bf16.msra.mxu0 0
    %963 = vmatpush.bf16.msra.mxu0 %v954
    %964 = vmatmul.bf16.gmra.mxu0 %v951
    %v965 = vpop.f32.mrf.mxu0
    %v966 = vadd.f32 0.0, %v965
    %v967 = vpop.f32.mrf.mxu0
    %968 = vdwg.mxu0
    %969 = vrot.lane.b32.xlu0 %v872, 64
    %v970 = vpop.permute.xlu0 %969
    %v972 = vsel %vm293, %v947, 0
    %v975 = vsel %vm349, %v970, 0
    %977 = vmatpush.bf16.msra.mxu0 0
    %978 = vmatpush.bf16.msra.mxu0 0
    %979 = vmatpush.bf16.msra.mxu0 0
    %980 = vmatpush.bf16.msra.mxu0 0
    %981 = vmatpush.bf16.msra.mxu0 0
    %982 = vmatpush.bf16.msra.mxu0 0
    %983 = vmatpush.bf16.msra.mxu0 0
    %984 = vmatpush.bf16.msra.mxu0 %v975
    %985 = vmatmul.bf16.gmra.mxu0 %v972
    %v986 = vpop.f32.mrf.mxu0
    %v987 = vadd.f32 0.0, %v986
    %v988 = vpop.f32.mrf.mxu0
    %989 = vdwg.mxu0
    %990 = vrot.lane.b32.xlu0 %v848, 112
    %v991 = vpop.permute.xlu0 %990
    %992 = vrot.lane.b32.xlu0 %v848, 80
    %v993 = vpop.permute.xlu0 %992
    %v995 = vsel %vm239, %v991, 0
    %v998 = vsel %vm239, %v993, 0
    %1000 = vmatpush.bf16.xpose.msra.mxu0 0
    %1001 = vmatpush.bf16.xpose.msra.mxu0 0
    %1002 = vmatpush.bf16.xpose.msra.mxu0 0
    %1003 = vmatpush.bf16.xpose.msra.mxu0 0
    %1004 = vmatpush.bf16.xpose.msra.mxu0 0
    %1005 = vmatpush.bf16.xpose.msra.mxu0 0
    %1006 = vmatpush.bf16.xpose.msra.mxu0 0
    %1007 = vmatpush.bf16.xpose.msra.mxu0 %v998
    %1008 = vmatmul.bf16.gmra.mxu0 %v995
    %v1009 = vpop.f32.mrf.mxu0
    %v1010 = vadd.f32 0.0, %v1009
    %v1011 = vpop.f32.mrf.mxu0
    %1012 = vdwg.mxu0
    %1013 = vrot.lane.b32.xlu0 %v872, 112
    %v1014 = vpop.permute.xlu0 %1013
    %1015 = vrot.lane.b32.xlu0 %v872, 80
    %v1016 = vpop.permute.xlu0 %1015
    %v1018 = vsel %vm239, %v1014, 0
    %v1021 = vsel %vm239, %v1016, 0
    %1023 = vmatpush.bf16.xpose.msra.mxu0 0
    %1024 = vmatpush.bf16.xpose.msra.mxu0 0
    %1025 = vmatpush.bf16.xpose.msra.mxu0 0
    %1026 = vmatpush.bf16.xpose.msra.mxu0 0
    %1027 = vmatpush.bf16.xpose.msra.mxu0 0
    %1028 = vmatpush.bf16.xpose.msra.mxu0 0
    %1029 = vmatpush.bf16.xpose.msra.mxu0 0
    %1030 = vmatpush.bf16.xpose.msra.mxu0 %v1021
    %1031 = vmatmul.bf16.gmra.mxu0 %v1018
    %v1032 = vpop.f32.mrf.mxu0
    %v1033 = vadd.f32 0.0, %v1032
    %v1034 = vpop.f32.mrf.mxu0
    %1035 = vdwg.mxu0
    %v1036 = vmul.f32 %v1010, 0.25
    %v1037 = vmul.f32 %v1033, 0.25
    %v1038 = vadd.f32 %v1036, %v287
    %v1039 = vadd.f32 %v1037, %v288
    %v1040 = vsel %vm293, %v1038, -inf
    %1041 = vmax.xlane.f32.xlu0 %v1040
    %v1042 = vpop.xlane.xlu0 %1041
    %v1043 = vsel %vm293, %v1039, -inf
    %1044 = vmax.xlane.f32.xlu0 %v1043
    %v1045 = vpop.xlane.xlu0 %1044
    %v1046 = vsub.f32 %v1038, %v1042
    %v1047 = vsub.f32 %v1039, %v1045
    %v1048 = vmul.f32 %v1046, 1.442695
    %v1049 = vpow.pop %v1048
    %v1050 = vmul.f32 %v1047, 1.442695
    %v1051 = vpow.pop %v1050
    %v1052 = vsel %vm293, %v1049, 0.0
    %1053 = vadd.xlane.f32.xlu0 %v1052
    %v1054 = vpop.xlane.xlu0 %1053
    %v1055 = vsel %vm293, %v1051, 0.0
    %1056 = vadd.xlane.f32.xlu0 %v1055
    %v1057 = vpop.xlane.xlu0 %1056
    %v1058 = vrcp.pop %v1054
    %v1059 = vmul.f32 %v1054, %v1058
    %v1060 = vsub.f32 1.0, %v1059
    %v1061 = vmul.f32 %v1058, %v1060
    %v1062 = vadd.f32 %v1058, %v1061
    %vm1063 = vweird.f32 %v1054
    %vm1064 = vweird.f32 %v1058
    %vm1065 = vmor %vm1063, %vm1064
    %v1066 = vsel %vm1065, %v1058, %v1062
    %v1067 = vand.u32 2147483647, %v1054
    %vm1068 = vcmp.eq.f32.partialorder %v1067, 8.507059e+37
    %v1069 = vand.u32 %v1054, 2147483648
    %v1070 = vor.u32 1.1754944e-38, %v1069
    %v1071 = vsel %vm1068, %v1070, %v1066
    %v1072 = vrcp.pop %v1057
    %v1073 = vmul.f32 %v1057, %v1072
    %v1074 = vsub.f32 1.0, %v1073
    %v1075 = vmul.f32 %v1072, %v1074
    %v1076 = vadd.f32 %v1072, %v1075
    %vm1077 = vweird.f32 %v1057
    %vm1078 = vweird.f32 %v1072
    %vm1079 = vmor %vm1077, %vm1078
    %v1080 = vsel %vm1079, %v1072, %v1076
    %v1081 = vand.u32 2147483647, %v1057
    %vm1082 = vcmp.eq.f32.partialorder %v1081, 8.507059e+37
    %v1083 = vand.u32 %v1057, 2147483648
    %v1084 = vor.u32 1.1754944e-38, %v1083
    %v1085 = vsel %vm1082, %v1084, %v1080
    %v1086 = vmul.f32 %v1049, %v1071
    %v1087 = vmul.f32 %v1051, %v1085
    %v1088 = vpack.c.bf16 %v1086, %v1086
    %v1089 = vpack.c.bf16 %v1087, %v1087
    %1090 = vrot.lane.b32.xlu0 %v848, 48
    %v1091 = vpop.permute.xlu0 %1090
    %v1093 = vsel %vm293, %v1088, 0
    %v1096 = vsel %vm349, %v1091, 0
    %1098 = vmatpush.bf16.msra.mxu0 0
    %1099 = vmatpush.bf16.msra.mxu0 0
    %1100 = vmatpush.bf16.msra.mxu0 0
    %1101 = vmatpush.bf16.msra.mxu0 0
    %1102 = vmatpush.bf16.msra.mxu0 0
    %1103 = vmatpush.bf16.msra.mxu0 0
    %1104 = vmatpush.bf16.msra.mxu0 0
    %1105 = vmatpush.bf16.msra.mxu0 %v1096
    %1106 = vmatmul.bf16.gmra.mxu0 %v1093
    %v1107 = vpop.f32.mrf.mxu0
    %v1108 = vadd.f32 0.0, %v1107
    %v1109 = vpop.f32.mrf.mxu0
    %1110 = vdwg.mxu0
    %1111 = vrot.lane.b32.xlu0 %v872, 48
    %v1112 = vpop.permute.xlu0 %1111
    %v1114 = vsel %vm293, %v1089, 0
    %v1117 = vsel %vm349, %v1112, 0
    %1119 = vmatpush.bf16.msra.mxu0 0
    %1120 = vmatpush.bf16.msra.mxu0 0
    %1121 = vmatpush.bf16.msra.mxu0 0
    %1122 = vmatpush.bf16.msra.mxu0 0
    %1123 = vmatpush.bf16.msra.mxu0 0
    %1124 = vmatpush.bf16.msra.mxu0 0
    %1125 = vmatpush.bf16.msra.mxu0 0
    %1126 = vmatpush.bf16.msra.mxu0 %v1117
    %1127 = vmatmul.bf16.gmra.mxu0 %v1114
    %v1128 = vpop.f32.mrf.mxu0
    %v1129 = vadd.f32 0.0, %v1128
    %v1130 = vpop.f32.mrf.mxu0
    %1131 = vdwg.mxu0
    %1134 = vrot.lane.b32.xlu0 %v1108, 16
    %v1135 = vpop.permute.xlu0 %1134
    %1136 = vrot.lane.b32.xlu0 %v1129, 16
    %v1137 = vpop.permute.xlu0 %1136
    %v1140 = vsel %vm239, %v966, %v1135
    %v1141 = vsel %vm239, %v987, %v1137
    %s1142 = scalar_lea.vmem %s9, 16
    %v1143 = vld [vmem:[%s1142] sm:$0xf]
    %v1144 = vld [vmem:[%s1142 + $0x4] sm:$0xf]
    %v1145 = vld [vmem:[%s1142 + $0x8] sm:$0xf]
    %v1146 = vld [vmem:[%s1142 + $0xc] sm:$0xf]
    %s1147 = scalar_lea.vmem %s10, 1
    %v1148 = vld [vmem:[%s1147] sm:$0x1]
    %v1149 = vpack.c.bf16 %v1141, %v1140
    %v1151 = vperm.slane %v1148, 0
    %v1157 = vunpack.c.l.b16 %v1143
    %v1158 = vunpack.c.l.b16 %v1144
    %v1159 = vunpack.c.l.b16 %v1145
    %v1160 = vunpack.c.l.b16 %v1146
    %v1161 = vpack.c.b16 %v1158, %v1157
    %v1162 = vpack.c.b16 %v1160, %v1159
    %v1166 = vsel %vm130, %v1149, 0
    %1168 = vmatpush.bf16.msra.mxu0 0
    %1169 = vmatpush.bf16.msra.mxu0 0
    %1170 = vmatpush.bf16.msra.mxu0 0
    %1171 = vmatpush.bf16.msra.mxu0 0
    %1172 = vmatpush.bf16.msra.mxu0 0
    %1173 = vmatpush.bf16.msra.mxu0 0
    %1174 = vmatpush.bf16.msra.mxu0 %v1162
    %1175 = vmatpush.bf16.msra.mxu0 %v1161
    %1176 = vmatmul.bf16.gmra.mxu0 %v1166
    %v1177 = vpop.f32.mrf.mxu0
    %v1178 = vadd.f32 %v1151, %v1177
    %v1179 = vpop.f32.mrf.mxu0
    %v1180 = vadd.f32 %v1151, %v1179
    %1181 = vdwg.mxu0
    %v1182 = vadd.f32 %v802, %v1178
    %v1183 = vadd.f32 %v803, %v1180
    %s1184 = scalar_lea.vmem %s11, 1
    %v1185 = vld [vmem:[%s1184] sm:$0x1]
    %s1186 = scalar_lea.vmem %s12, 1
    %v1187 = vld [vmem:[%s1186] sm:$0x1]
    %v1188 = vsel %vm130, %v1182, 0.0
    %1189 = vadd.xlane.f32.xlu0 %v1188
    %v1190 = vpop.xlane.xlu0 %1189
    %v1191 = vsel %vm130, %v1183, 0.0
    %1192 = vadd.xlane.f32.xlu0 %v1191
    %v1193 = vpop.xlane.xlu0 %1192
    %v1194 = vmul.f32 %v1190, %v143
    %v1195 = vmul.f32 %v1193, %v143
    %v1196 = vsub.f32 %v1182, %v1194
    %v1197 = vsub.f32 %v1183, %v1195
    %v1198 = vmul.f32 %v1196, %v1196
    %v1199 = vmul.f32 %v1197, %v1197
    %v1200 = vsel %vm130, %v1198, 0.0
    %1201 = vadd.xlane.f32.xlu0 %v1200
    %v1202 = vpop.xlane.xlu0 %1201
    %v1203 = vsel %vm130, %v1199, 0.0
    %1204 = vadd.xlane.f32.xlu0 %v1203
    %v1205 = vpop.xlane.xlu0 %1204
    %v1206 = vmul.f32 %v1202, %v143
    %v1207 = vmul.f32 %v1205, %v143
    %v1208 = vadd.f32 %v1206, 1e-12
    %v1209 = vadd.f32 %v1207, 1e-12
    %v1210 = vrsqrt.pop %v1208
    %v1211 = vmul.f32 %v1210, %v1208
    %v1212 = vmul.f32 %v1211, %v1210
    %v1213 = vmul.f32 0.5, %v1212
    %v1214 = vsub.f32 1.5, %v1213
    %v1215 = vmul.f32 %v1210, %v1214
    %vm1216 = vweird.f32 %v1208
    %vm1217 = vweird.f32 %v1210
    %vm1218 = vmor %vm1216, %vm1217
    %v1219 = vsel %vm1218, %v1210, %v1215
    %v1220 = vrsqrt.pop %v1209
    %v1221 = vmul.f32 %v1220, %v1209
    %v1222 = vmul.f32 %v1221, %v1220
    %v1223 = vmul.f32 0.5, %v1222
    %v1224 = vsub.f32 1.5, %v1223
    %v1225 = vmul.f32 %v1220, %v1224
    %vm1226 = vweird.f32 %v1209
    %vm1227 = vweird.f32 %v1220
    %vm1228 = vmor %vm1226, %vm1227
    %v1229 = vsel %vm1228, %v1220, %v1225
    %v1230 = vmul.f32 %v1196, %v1219
    %v1231 = vmul.f32 %v1197, %v1229
    %v1233 = vperm.slane %v1185, 0
    %v1235 = vmul.f32 %v1230, %v1233
    %v1236 = vmul.f32 %v1231, %v1233
    %v1238 = vperm.slane %v1187, 0
    %v1240 = vadd.f32 %v1235, %v1238
    %v1241 = vadd.f32 %v1236, %v1238
    %s1242 = scalar_lea.vmem %s13, 16
    %v1243 = vld [vmem:[%s1242] sm:$0xf]
    %v1244 = vld [vmem:[%s1242 + $0x4] sm:$0xf]
    %v1245 = vld [vmem:[%s1242 + $0x8] sm:$0xf]
    %v1246 = vld [vmem:[%s1242 + $0xc] sm:$0xf]
    %s1247 = scalar_lea.vmem %s14, 1
    %v1248 = vld [vmem:[%s1247] sm:$0x1]
    %v1249 = vpack.c.bf16 %v1241, %v1240
    %v1251 = vperm.slane %v1248, 0
    %v1257 = vunpack.c.l.b16 %v1243
    %v1258 = vunpack.c.l.b16 %v1244
    %v1259 = vunpack.c.l.b16 %v1245
    %v1260 = vunpack.c.l.b16 %v1246
    %v1261 = vpack.c.b16 %v1258, %v1257
    %v1262 = vpack.c.b16 %v1260, %v1259
    %v1266 = vsel %vm130, %v1249, 0
    %1268 = vmatpush.bf16.msra.mxu0 0
    %1269 = vmatpush.bf16.msra.mxu0 0
    %1270 = vmatpush.bf16.msra.mxu0 0
    %1271 = vmatpush.bf16.msra.mxu0 0
    %1272 = vmatpush.bf16.msra.mxu0 0
    %1273 = vmatpush.bf16.msra.mxu0 0
    %1274 = vmatpush.bf16.msra.mxu0 %v1262
    %1275 = vmatpush.bf16.msra.mxu0 %v1261
    %1276 = vmatmul.bf16.gmra.mxu0 %v1266
    %v1277 = vpop.f32.mrf.mxu0
    %v1278 = vadd.f32 %v1251, %v1277
    %v1279 = vpop.f32.mrf.mxu0
    %v1280 = vadd.f32 %v1251, %v1279
    %1281 = vdwg.mxu0
    %v1282 = vmul.f32 %v1278, 0.5
    %v1283 = vmul.f32 %v1280, 0.5
    %v1284 = vmul.f32 %v1278, 0.044715
    %v1285 = vmul.f32 %v1280, 0.044715
    %v1286 = vmul.f32 %v1284, %v1278
    %v1287 = vmul.f32 %v1285, %v1280
    %v1288 = vmul.f32 %v1286, %v1278
    %v1289 = vmul.f32 %v1287, %v1280
    %v1290 = vadd.f32 %v1278, %v1288
    %v1291 = vadd.f32 %v1280, %v1289
    %v1292 = vmul.f32 %v1290, 0.7978846
    %v1293 = vmul.f32 %v1291, 0.7978846
    %v1294 = vtanh.pop %v1292
    %v1295 = vtanh.pop %v1293
    %v1296 = vadd.f32 %v1294, 1.0
    %v1297 = vadd.f32 %v1295, 1.0
    %v1298 = vmul.f32 %v1282, %v1296
    %v1299 = vmul.f32 %v1283, %v1297
    %s1300 = scalar_lea.vmem %s15, 32
    %v1301 = vld [vmem:[%s1300] sm:$0xf]
    %v1302 = vld [vmem:[%s1300 + $0x4] sm:$0xf]
    %v1303 = vld [vmem:[%s1300 + $0x8] sm:$0xf]
    %v1304 = vld [vmem:[%s1300 + $0xc] sm:$0xf]
    %v1305 = vld [vmem:[%s1300 + $0x10] sm:$0xf]
    %v1306 = vld [vmem:[%s1300 + $0x14] sm:$0xf]
    %v1307 = vld [vmem:[%s1300 + $0x18] sm:$0xf]
    %v1308 = vld [vmem:[%s1300 + $0x1c] sm:$0xf]
    %s1309 = scalar_lea.vmem %s16, 1
    %v1310 = vld [vmem:[%s1309] sm:$0x1]
    %v1311 = vpack.c.bf16 %v1299, %v1298
    %v1313 = vperm.slane %v1310, 0
    %v1323 = vunpack.c.l.b16 %v1301
    %v1324 = vunpack.c.l.b16 %v1302
    %v1325 = vunpack.c.l.b16 %v1303
    %v1326 = vunpack.c.l.b16 %v1304
    %v1327 = vunpack.c.l.b16 %v1305
    %v1328 = vunpack.c.l.b16 %v1306
    %v1329 = vunpack.c.l.b16 %v1307
    %v1330 = vunpack.c.l.b16 %v1308
    %v1331 = vpack.c.b16 %v1324, %v1323
    %v1332 = vpack.c.b16 %v1326, %v1325
    %v1333 = vpack.c.b16 %v1328, %v1327
    %v1334 = vpack.c.b16 %v1330, %v1329
    %v1340 = vsel %vm728, %v1311, 0
    %1342 = vmatpush.bf16.msra.mxu0 0
    %1343 = vmatpush.bf16.msra.mxu0 0
    %1344 = vmatpush.bf16.msra.mxu0 0
    %1345 = vmatpush.bf16.msra.mxu0 0
    %1346 = vmatpush.bf16.msra.mxu0 %v1334
    %1347 = vmatpush.bf16.msra.mxu0 %v1333
    %1348 = vmatpush.bf16.msra.mxu0 %v1332
    %1349 = vmatpush.bf16.msra.mxu0 %v1331
    %1350 = vmatmul.bf16.gmra.mxu0 %v1340
    %v1351 = vpop.f32.mrf.mxu0
    %v1352 = vadd.f32 %v1313, %v1351
    %v1353 = vpop.f32.mrf.mxu0
    %v1354 = vadd.f32 %v1313, %v1353
    %1355 = vdwg.mxu0
    %v1356 = vadd.f32 %v1240, %v1352
    %v1357 = vadd.f32 %v1241, %v1354
    %s1358 = scalar_lea.vmem %s17, 1
    %v1359 = vld [vmem:[%s1358] sm:$0x1]
    %s1360 = scalar_lea.vmem %s18, 1
    %v1361 = vld [vmem:[%s1360] sm:$0x1]
    %v1362 = vsel %vm130, %v1356, 0.0
    %1363 = vadd.xlane.f32.xlu0 %v1362
    %v1364 = vpop.xlane.xlu0 %1363
    %v1365 = vsel %vm130, %v1357, 0.0
    %1366 = vadd.xlane.f32.xlu0 %v1365
    %v1367 = vpop.xlane.xlu0 %1366
    %v1368 = vmul.f32 %v1364, %v143
    %v1369 = vmul.f32 %v1367, %v143
    %v1370 = vsub.f32 %v1356, %v1368
    %v1371 = vsub.f32 %v1357, %v1369
    %v1372 = vmul.f32 %v1370, %v1370
    %v1373 = vmul.f32 %v1371, %v1371
    %v1374 = vsel %vm130, %v1372, 0.0
    %1375 = vadd.xlane.f32.xlu0 %v1374
    %v1376 = vpop.xlane.xlu0 %1375
    %v1377 = vsel %vm130, %v1373, 0.0
    %1378 = vadd.xlane.f32.xlu0 %v1377
    %v1379 = vpop.xlane.xlu0 %1378
    %v1380 = vmul.f32 %v1376, %v143
    %v1381 = vmul.f32 %v1379, %v143
    %v1382 = vadd.f32 %v1380, 1e-12
    %v1383 = vadd.f32 %v1381, 1e-12
    %v1384 = vrsqrt.pop %v1382
    %v1385 = vmul.f32 %v1384, %v1382
    %v1386 = vmul.f32 %v1385, %v1384
    %v1387 = vmul.f32 0.5, %v1386
    %v1388 = vsub.f32 1.5, %v1387
    %v1389 = vmul.f32 %v1384, %v1388
    %vm1390 = vweird.f32 %v1382
    %vm1391 = vweird.f32 %v1384
    %vm1392 = vmor %vm1390, %vm1391
    %v1393 = vsel %vm1392, %v1384, %v1389
    %v1394 = vrsqrt.pop %v1383
    %v1395 = vmul.f32 %v1394, %v1383
    %v1396 = vmul.f32 %v1395, %v1394
    %v1397 = vmul.f32 0.5, %v1396
    %v1398 = vsub.f32 1.5, %v1397
    %v1399 = vmul.f32 %v1394, %v1398
    %vm1400 = vweird.f32 %v1383
    %vm1401 = vweird.f32 %v1394
    %vm1402 = vmor %vm1400, %vm1401
    %v1403 = vsel %vm1402, %v1394, %v1399
    %v1404 = vmul.f32 %v1370, %v1393
    %v1405 = vmul.f32 %v1371, %v1403
    %v1407 = vperm.slane %v1359, 0
    %v1409 = vmul.f32 %v1404, %v1407
    %v1410 = vmul.f32 %v1405, %v1407
    %v1412 = vperm.slane %v1361, 0
    %v1414 = vadd.f32 %v1409, %v1412
    %v1415 = vadd.f32 %v1410, %v1412
    %v1416 = vld [vmem:[%s19] sm:$0xff]
    %v1417 = vld [vmem:[%s19 + $0x8] sm:$0xff]
    %v1418 = vld [vmem:[%s19 + $0x10] sm:$0xff]
    %v1419 = vld [vmem:[%s19 + $0x18] sm:$0xff]
    %v1420 = vld [vmem:[%s20] sm:$0x1]
    %v1422 = vperm.slane %v1420, 0
    %v1425 = vsel %vm130, %v1414, 0
    %v1428 = vsel %vm130, %v1415, 0
    %1430 = vmatpush.msra.mxu0 0.0
    %1431 = vmatpush.msra.mxu0 0.0
    %1432 = vmatpush.msra.mxu0 0.0
    %1433 = vmatpush.msra.mxu0 0.0
    %1434 = vmatpush.msra.mxu0 0.0
    %1435 = vmatpush.msra.mxu0 0.0
    %1436 = vmatpush.msra.mxu0 0.0
    %1437 = vmatpush.msra.mxu0 0.0
    %1438 = vmatpush.msra.mxu0 0.0
    %1439 = vmatpush.msra.mxu0 0.0
    %1440 = vmatpush.msra.mxu0 0.0
    %1441 = vmatpush.msra.mxu0 0.0
    %1442 = vmatpush.msra.mxu0 %v1419
    %1443 = vmatpush.msra.mxu0 %v1418
    %1444 = vmatpush.msra.mxu0 %v1417
    %1445 = vmatpush.msra.mxu0 %v1416
    %1446 = vmatmul.f32.gmra.mxu0 %v1425
    %v1447 = vpop.f32.mrf.mxu0
    %v1448 = vadd.f32 %v1422, %v1447
    %1449 = vmatmul.f32.gmra.mxu0 %v1428
    %v1450 = vpop.f32.mrf.mxu0
    %v1451 = vadd.f32 %v1422, %v1450
    %1452 = vdwg.mxu0
    %1453 = vst [vmem:[%s21] sm:$0xff] %v1448
    %1454 = vst [vmem:[%s21 + $0x8] sm:$0xff] %v1451
    %v1455 = vld [vmem:[%s2] sm:$0xff]
    %v1456 = vld [vmem:[%s2 + $0x8] sm:$0xff]
    %1457 = vmax.xlane.f32.xlu0 %v1448
    %v1458 = vpop.xlane.xlu0 %1457
    %1459 = vmax.xlane.f32.xlu0 %v1451
    %v1460 = vpop.xlane.xlu0 %1459
    %v1461 = vsub.f32 %v1448, %v1458
    %v1462 = vsub.f32 %v1451, %v1460
    %v1463 = vmul.f32 %v1461, 1.442695
    %v1464 = vpow.pop %v1463
    %v1465 = vmul.f32 %v1462, 1.442695
    %v1466 = vpow.pop %v1465
    %1467 = vadd.xlane.f32.xlu0 %v1464
    %v1468 = vpop.xlane.xlu0 %1467
    %1469 = vadd.xlane.f32.xlu0 %v1466
    %v1470 = vpop.xlane.xlu0 %1469
    %v1471 = vlog2.pop %v1468
    %v1472 = vmul.f32 %v1471, 0.6931472
    %v1473 = vlog2.pop %v1470
    %v1474 = vmul.f32 %v1473, 0.6931472
    %v1475 = vadd.f32 %v1472, %v1458
    %v1476 = vadd.f32 %v1474, %v1460
    %vm1477 = vcmp.ne.s32.totalorder %v1455, 4294967196
    %vm1478 = vcmp.ne.s32.totalorder %v1456, 4294967196
    %v1479 = vsel %vm1477, %v1455, 0
    %v1480 = vsel %vm1478, %v1456, 0
    %1481 = vset.pattern.permute.xlu0 0
    %1482 = vperm.xlu0 %1481, %v1479
    %v1483 = vpop.permute.xlu0 %1482
    %1484 = vset.pattern.permute.xlu0 0
    %1485 = vperm.xlu0 %1484, %v1480
    %v1486 = vpop.permute.xlu0 %1485
    %vm1487 = vcmp.eq.s32.totalorder %v75, %v1483
    %vm1488 = vcmp.eq.s32.totalorder %v75, %v1486
    %v1489 = vsel %vm1487, 1, 0
    %v1490 = vsel %vm1488, 1, 0
    %v1491 = vcvt.s32.f32 %v1489
    %v1492 = vcvt.s32.f32 %v1490
    %v1493 = vmul.f32 %v1448, %v1491
    %v1494 = vmul.f32 %v1451, %v1492
    %1495 = vadd.xlane.f32.xlu0 %v1493
    %v1496 = vpop.xlane.xlu0 %1495
    %1497 = vadd.xlane.f32.xlu0 %v1494
    %v1498 = vpop.xlane.xlu0 %1497
    %v1499 = vsel %vm1477, 1, 0
    %v1500 = vsel %vm1478, 1, 0
    %v1501 = vcvt.s32.f32 %v1499
    %v1502 = vcvt.s32.f32 %v1500
    %v1503 = vsub.f32 %v1475, %v1496
    %v1504 = vsub.f32 %v1476, %v1498
    %v1505 = vmul.f32 %v1503, %v1501
    %v1506 = vmul.f32 %v1504, %v1502
    %vm1507 = vcmask 7168
    %v1508 = vsel %vm1507, %v1505, 0.0
    %v1509 = vsel %vm1507, %v1506, 0.0
    %v1510 = vadd.f32 %v1508, %v1509
    %v1511 = vrot.slane %v1510, 4
    %v1512 = vadd.f32 %v1510, %v1511
    %v1513 = vrot.slane %v1512, 2
    %v1514 = vadd.f32 %v1512, %v1513
    %v1515 = vrot.slane %v1514, 1
    %v1516 = vadd.f32 %v1514, %v1515
    %v1517 = vsel %vm1507, %v1501, 0.0
    %v1518 = vsel %vm1507, %v1502, 0.0
    %v1519 = vadd.f32 %v1517, %v1518
    %v1520 = vrot.slane %v1519, 4
    %v1521 = vadd.f32 %v1519, %v1520
    %v1522 = vrot.slane %v1521, 2
    %v1523 = vadd.f32 %v1521, %v1522
    %v1524 = vrot.slane %v1523, 1
    %v1525 = vadd.f32 %v1523, %v1524
    %v1526 = vmax.f32 %v1525, 1.0
    %v1527 = vrcp.pop %v1526
    %v1528 = vmul.f32 %v1526, %v1527
    %v1529 = vsub.f32 1.0, %v1528
    %v1530 = vmul.f32 %v1527, %v1529
    %v1531 = vadd.f32 %v1527, %v1530
    %vm1532 = vweird.f32 %v1526
    %vm1533 = vweird.f32 %v1527
    %vm1534 = vmor %vm1532, %vm1533
    %v1535 = vsel %vm1534, %v1527, %v1531
    %v1536 = vand.u32 2147483647, %v1526
    %vm1537 = vcmp.eq.f32.partialorder %v1536, 8.507059e+37
    %v1538 = vand.u32 %v1526, 2147483648
    %v1539 = vor.u32 1.1754944e-38, %v1538
    %v1540 = vsel %vm1537, %v1539, %v1535
    %v1541 = vmul.f32 %v1516, %v1540
    %vm1542 = vcmask 0
    %1543 = vst.msk [vmem:[#allocation2] sm:$0x1] %vm1542, %v1541
    // Predicated region
    $region86: #{nug_forward.1} parent=1 // pred_check
      _
    $region87: #{nug_forward.1} parent=1 // pred_check_branch
      %1545 = sbr.rel (0) target = $region89
    $region88: #{nug_forward.1} parent=1 // pred_region
      _
    $region89: #{nug_forward.1} parent=1 // pred_fallthru
      _
    // Predicated region
    $region90: #{nug_forward.1} parent=1 // pred_check
      _
    $region91: #{nug_forward.1} parent=1 // pred_check_branch
      %1547 = sbr.rel (0) target = $region93
    $region92: #{nug_forward.1} parent=1 // pred_region
      %1549 = vsyncadd [#allocation3], 0
      %s1551 = sshll.u32 [#allocation2], 4
      %s1552 = int_to_ptr.vmem [resolvable:$true] %s1551
      %s1553 = sshll.u32 %s22, 4
      %s1554 = int_to_ptr.hbm [resolvable:$true] %s1553
      %1556 = dma.vmem_to_hbm [thread:$0]  %s1552, 16, %s1554, [#allocation3]
    $region93: #{nug_forward.1} parent=1 // pred_fallthru
      _
    // Predicated region
    $region94: #{nug_forward.1} parent=1 // pred_check
      _
    $region95: #{nug_forward.1} parent=1 // pred_check_branch
      %1558 = sbr.rel (0) target = $region97
    $region96: #{nug_forward.1} parent=1 // pred_region
      _
    $region97: #{nug_forward.1} parent=1 // pred_fallthru
      _
    // Predicated region
    $region98: #{nug_forward.1} parent=1 // pred_check
      _
    $region99: #{nug_forward.1} parent=1 // pred_check_branch
      %1560 = sbr.rel (0) target = $region101
    $region100: #{nug_forward.1} parent=1 // pred_region
      %1562 = dma.done [#allocation3], 16
    $region101: #{nug_forward.1} parent=1 // pred_fallthru
      _
    %1563 = vsyncpa [#allocation3], 1

</llo_original>
